<compile_context>
chip_gen: v6e
topology: v6e:2x2x1
jax: 0.10.0
libtpu: 0.0.40
codegen_flags: <defaults>
</compile_context>

<pallas_src>
import functools
import math

import jax
import jax.numpy as jnp
from jax import lax
from jax.experimental import pallas as pl
from jax.experimental.pallas import tpu as pltpu


def _sigmoid(z):
    # Keep the epilogue to exp + div only (f32, EUP/VPU friendly on all gens).
    return 1.0 / (1.0 + jnp.exp(-z))


def _convlstm_kernel(xh_ref, c_ref, w_ref, b_ref, wci_ref, wcf_ref, wco_ref,
                     hn_ref, cn_ref, *, H, W, hidden, ksize):
    """Fused ConvLSTM cell step for one sample (one grid step).

    xh_ref : (1, H+k-1, W+k-1, Cin+Chid)  zero-padded concat([x, h_cur]), bf16
    c_ref  : (1, H*W, Chid)               c_cur, f32
    w_ref  : (k*k, Cin+Chid, 4*Chid)      concat conv_x/conv_h weights by tap, bf16
    b_ref  : (1, 4*Chid)                  conv_x bias, f32
    wci/wcf/wco_ref : (H*W, Chid)         peephole weights, f32
    hn_ref, cn_ref  : (1, H*W, Chid)      outputs h_next / c_next, f32
    """
    hw = H * W
    ctot = xh_ref.shape[-1]

    # k*k shifted-window partial matmuls, accumulated in f32 on the MXU.
    # The taps are read from the padded VMEM-resident sample -> no HBM im2col.
    acc = jnp.zeros((hw, 4 * hidden), jnp.float32)
    for t in range(ksize * ksize):
        kh, kw = divmod(t, ksize)
        slab = xh_ref[0, pl.ds(kh, H), pl.ds(kw, W), :].reshape(hw, ctot)
        acc += jnp.dot(slab, w_ref[t], preferred_element_type=jnp.float32)

    g = acc + b_ref[...]                       # (hw, 4*hidden), f32
    c = c_ref[0]                               # (hw, hidden),   f32

    # PyTorch gate order from `.split(hidden_dim, dim=1)`: i, f, o, c.
    gi = g[:, 0 * hidden:1 * hidden]
    gf = g[:, 1 * hidden:2 * hidden]
    go = g[:, 2 * hidden:3 * hidden]
    gc = g[:, 3 * hidden:4 * hidden]

    i = _sigmoid(gi + c * wci_ref[...])
    f = _sigmoid(gf + c * wcf_ref[...])
    c_next = f * c + i * jnp.tanh(gc)
    o = _sigmoid(go + c * wco_ref[...])
    h_next = o * jnp.tanh(c_next)

    hn_ref[0] = h_next.astype(hn_ref.dtype)
    cn_ref[0] = c_next.astype(cn_ref.dtype)


def conv_lstm_cell(params, x, h_cur, c_cur):
    """One ConvLSTMCell step, PyTorch-compatible I/O.

    x      : (N, Cin, H, W)   f32, NCHW
    h_cur  : (N, Chid, H, W)  f32, NCHW
    c_cur  : (N, Chid, H, W)  f32, NCHW
    returns (h_next, c_next), each (N, Chid, H, W) f32.
    """
    N, cin, H, W = x.shape
    hid = h_cur.shape[1]
    k = params["wx"].shape[-1]
    pad = k // 2
    hw = H * W
    ctot = cin + hid
    hp, wp = H + 2 * pad, W + 2 * pad

    # ---- layout prep (API boundary only): NCHW -> NHWC, concat x|h, pad, bf16
    x_nhwc = jnp.transpose(x, (0, 2, 3, 1))
    h_nhwc = jnp.transpose(h_cur, (0, 2, 3, 1))
    xh = jnp.concatenate([x_nhwc, h_nhwc], axis=-1)
    xh_p = jnp.pad(xh, ((0, 0), (pad, pad), (pad, pad), (0, 0))).astype(jnp.bfloat16)
    c_flat = jnp.transpose(c_cur, (0, 2, 3, 1)).reshape(N, hw, hid).astype(jnp.float32)

    # Conv weights: PyTorch OIHW -> (tap, Cin_total, 4*hid), bf16 for the MXU.
    wx = jnp.transpose(params["wx"], (2, 3, 1, 0)).reshape(k * k, cin, 4 * hid)
    wh = jnp.transpose(params["wh"], (2, 3, 1, 0)).reshape(k * k, hid, 4 * hid)
    w_taps = jnp.concatenate([wx, wh], axis=1).astype(jnp.bfloat16)
    bias = params["bx"].reshape(1, 4 * hid).astype(jnp.float32)

    # Peephole weights (1, hid, H, W) -> (H*W, hid), f32, shared across batch.
    def _peep(p):
        return jnp.transpose(p[0], (1, 2, 0)).reshape(hw, hid).astype(jnp.float32)
    wci, wcf, wco = _peep(params["wci"]), _peep(params["wcf"]), _peep(params["wco"])

    kernel = functools.partial(_convlstm_kernel, H=H, W=W, hidden=hid, ksize=k)
    h_next, c_next = pl.pallas_call(
        kernel,
        grid=(N,),
        in_specs=[
            pl.BlockSpec((1, hp, wp, ctot), lambda n: (n, 0, 0, 0)),   # padded [x|h]
            pl.BlockSpec((1, hw, hid), lambda n: (n, 0, 0)),           # c_cur
            pl.BlockSpec((k * k, ctot, 4 * hid), lambda n: (0, 0, 0)), # conv weights
            pl.BlockSpec((1, 4 * hid), lambda n: (0, 0)),              # bias
            pl.BlockSpec((hw, hid), lambda n: (0, 0)),                 # Wci
            pl.BlockSpec((hw, hid), lambda n: (0, 0)),                 # Wcf
            pl.BlockSpec((hw, hid), lambda n: (0, 0)),                 # Wco
        ],
        out_specs=[
            pl.BlockSpec((1, hw, hid), lambda n: (n, 0, 0)),
            pl.BlockSpec((1, hw, hid), lambda n: (n, 0, 0)),
        ],
        out_shape=[
            jax.ShapeDtypeStruct((N, hw, hid), jnp.float32),
            jax.ShapeDtypeStruct((N, hw, hid), jnp.float32),
        ],
        compiler_params=pltpu.CompilerParams(
            dimension_semantics=("parallel",),      # megacore-shardable batch axis
            vmem_limit_bytes=32 * 1024 * 1024,      # explicit, safe on v5e/v6e/v7x
        ),
    )(xh_p, c_flat, w_taps, bias, wci, wcf, wco)

    def to_nchw(a):
        return jnp.transpose(a.reshape(N, H, W, hid), (0, 3, 1, 2))
    return to_nchw(h_next), to_nchw(c_next)


def init_hidden(batch, hidden_dim, H, W):
    """Mirrors ConvLSTMCell.init_hidden (zero h_0 / c_0 expanded to the map)."""
    z = jnp.zeros((batch, hidden_dim, H, W), jnp.float32)
    return z, z


def init_params(key, input_dim, hidden_dim, kernel_size=3, map_h=8, map_w=8):
    k = kernel_size
    kx, kb, khw, ki, kf, ko = jax.random.split(key, 6)
    fan_x = input_dim * k * k
    fan_h = hidden_dim * k * k
    return {
        "wx": jax.random.normal(kx, (4 * hidden_dim, input_dim, k, k),
                                jnp.float32) / math.sqrt(fan_x),
        "bx": 0.01 * jax.random.normal(kb, (4 * hidden_dim,), jnp.float32),
        "wh": jax.random.normal(khw, (4 * hidden_dim, hidden_dim, k, k),
                                jnp.float32) / math.sqrt(fan_h),
        # PyTorch inits Wci/Wcf/Wco to zeros; small random values here so the
        # peephole path is actually exercised by the numerical check.
        "wci": 0.1 * jax.random.normal(ki, (1, hidden_dim, map_h, map_w), jnp.float32),
        "wcf": 0.1 * jax.random.normal(kf, (1, hidden_dim, map_h, map_w), jnp.float32),
        "wco": 0.1 * jax.random.normal(ko, (1, hidden_dim, map_h, map_w), jnp.float32),
    }


def conv_lstm_cell_ref(params, x, h_cur, c_cur):
    """Pure-JAX f32 reference matching the PyTorch forward exactly."""
    dn = ("NCHW", "OIHW", "NCHW")
    gx = lax.conv_general_dilated(x, params["wx"], (1, 1), "SAME",
                                  dimension_numbers=dn)
    gx = gx + params["bx"][None, :, None, None]
    gh = lax.conv_general_dilated(h_cur, params["wh"], (1, 1), "SAME",
                                  dimension_numbers=dn)
    gi, gf, go, gc = jnp.split(gx + gh, 4, axis=1)
    i = jax.nn.sigmoid(gi + c_cur * params["wci"])
    f = jax.nn.sigmoid(gf + c_cur * params["wcf"])
    c_next = f * c_cur + i * jnp.tanh(gc)
    o = jax.nn.sigmoid(go + c_cur * params["wco"])
    h_next = o * jnp.tanh(c_next)
    return h_next, c_next


if __name__ == "__main__":
    key = jax.random.PRNGKey(0)
    kp, kx, kh0, kc0 = jax.random.split(key, 4)

    N, cin, hid, H, W = 2, 4, 32, 8, 8          # map_h = map_w = 8 (module default)
    params = init_params(kp, cin, hid, kernel_size=3, map_h=H, map_w=W)
    x = jax.random.normal(kx, (N, cin, H, W), jnp.float32)
    # Random recurrent state (instead of init_hidden zeros) so conv_h and the
    # peephole terms are actually exercised.
    h0 = jax.random.normal(kh0, (N, hid, H, W), jnp.float32)
    c0 = jax.random.normal(kc0, (N, hid, H, W), jnp.float32)

    step = jax.jit(conv_lstm_cell)
    h1, c1 = jax.block_until_ready(step(params, x, h0, c0))

    h_exp, c_exp = conv_lstm_cell_ref(params, x, h0, c0)

    assert h1.shape == (N, hid, H, W) and c1.shape == (N, hid, H, W)
    assert bool(jnp.all(jnp.isfinite(h1))) and bool(jnp.all(jnp.isfinite(c1)))
    # bf16 MXU inputs vs f32 reference -> loose absolute tolerance.
    assert bool(jnp.max(jnp.abs(h1 - h_exp)) < 0.1)
    assert bool(jnp.max(jnp.abs(c1 - c_exp)) < 0.1)
    print("KERNEL_OK")
</pallas_src>

<mosaic_0001>
module attributes {stable_mosaic.version = 11 : i64} {
  func.func @_convlstm_kernel(%arg0: i32, %arg1: memref<1x10x10x36xbf16, #tpu.memory_space<vmem>>, %arg2: memref<1x64x32xf32, #tpu.memory_space<vmem>>, %arg3: memref<9x36x128xbf16, #tpu.memory_space<vmem>>, %arg4: memref<1x128xf32, #tpu.memory_space<vmem>>, %arg5: memref<64x32xf32, #tpu.memory_space<vmem>>, %arg6: memref<64x32xf32, #tpu.memory_space<vmem>>, %arg7: memref<64x32xf32, #tpu.memory_space<vmem>>, %arg8: memref<1x64x32xf32, #tpu.memory_space<vmem>>, %arg9: memref<1x64x32xf32, #tpu.memory_space<vmem>>) attributes {dimension_semantics = [#tpu.dimension_semantics<parallel>], iteration_bounds = array<i64: 2>, scalar_prefetch = 0 : i64, scratch_operands = 0 : i64, tpu.core_type = #tpu.core_type<tc>, window_params = [{transform_indices = @transform_0, window_bounds = array<i64: 1, 10, 10, 36>}, {transform_indices = @transform_1, window_bounds = array<i64: 1, 64, 32>}, {pipeline_mode = #tpu.pipeline_mode<synchronous>, transform_indices = @transform_2, window_bounds = array<i64: 9, 36, 128>}, {pipeline_mode = #tpu.pipeline_mode<synchronous>, transform_indices = @transform_3, window_bounds = array<i64: 1, 128>}, {pipeline_mode = #tpu.pipeline_mode<synchronous>, transform_indices = @transform_4, window_bounds = array<i64: 64, 32>}, {pipeline_mode = #tpu.pipeline_mode<synchronous>, transform_indices = @transform_5, window_bounds = array<i64: 64, 32>}, {pipeline_mode = #tpu.pipeline_mode<synchronous>, transform_indices = @transform_6, window_bounds = array<i64: 64, 32>}, {transform_indices = @transform_7, window_bounds = array<i64: 1, 64, 32>}, {transform_indices = @transform_8, window_bounds = array<i64: 1, 64, 32>}]} {
    %cst = arith.constant 0.000000e+00 : f32
    %0 = vector.broadcast %cst : f32 to vector<64x128xf32>
    %c0 = arith.constant 0 : index
    %c0_0 = arith.constant 0 : index
    %c0_1 = arith.constant 0 : index
    %c0_2 = arith.constant 0 : index
    %1 = vector.load %arg1[%c0, %c0_0, %c0_1, %c0_2] : memref<1x10x10x36xbf16, #tpu.memory_space<vmem>>, vector<1x8x8x36xbf16>
    %2 = vector.shape_cast %1 : vector<1x8x8x36xbf16> to vector<8x8x36xbf16>
    %3 = vector.shape_cast %2 : vector<8x8x36xbf16> to vector<64x36xbf16>
    %c0_3 = arith.constant 0 : index
    %c0_4 = arith.constant 0 : index
    %c0_5 = arith.constant 0 : index
    %4 = vector.load %arg3[%c0_3, %c0_4, %c0_5] : memref<9x36x128xbf16, #tpu.memory_space<vmem>>, vector<1x36x128xbf16>
    %5 = vector.shape_cast %4 : vector<1x36x128xbf16> to vector<36x128xbf16>
    %cst_6 = arith.constant dense<0.000000e+00> : vector<64x128xf32>
    %6 = tpu.matmul %3, %5, %cst_6 {dimension_numbers = #tpu.dot_dimension_numbers<[1], [0], [0], [1], [0, 0, 1, 1], [], []>} : vector<64x36xbf16>, vector<36x128xbf16>, vector<64x128xf32> -> vector<64x128xf32>
    %7 = arith.addf %0, %6 : vector<64x128xf32>
    %c0_7 = arith.constant 0 : index
    %c0_8 = arith.constant 0 : index
    %c1 = arith.constant 1 : index
    %c0_9 = arith.constant 0 : index
    %8 = vector.load %arg1[%c0_7, %c0_8, %c1, %c0_9] : memref<1x10x10x36xbf16, #tpu.memory_space<vmem>>, vector<1x8x8x36xbf16>
    %9 = vector.shape_cast %8 : vector<1x8x8x36xbf16> to vector<8x8x36xbf16>
    %10 = vector.shape_cast %9 : vector<8x8x36xbf16> to vector<64x36xbf16>
    %c1_10 = arith.constant 1 : index
    %c0_11 = arith.constant 0 : index
    %c0_12 = arith.constant 0 : index
    %11 = vector.load %arg3[%c1_10, %c0_11, %c0_12] : memref<9x36x128xbf16, #tpu.memory_space<vmem>>, vector<1x36x128xbf16>
    %12 = vector.shape_cast %11 : vector<1x36x128xbf16> to vector<36x128xbf16>
    %cst_13 = arith.constant dense<0.000000e+00> : vector<64x128xf32>
    %13 = tpu.matmul %10, %12, %cst_13 {dimension_numbers = #tpu.dot_dimension_numbers<[1], [0], [0], [1], [0, 0, 1, 1], [], []>} : vector<64x36xbf16>, vector<36x128xbf16>, vector<64x128xf32> -> vector<64x128xf32>
    %14 = arith.addf %7, %13 : vector<64x128xf32>
    %c0_14 = arith.constant 0 : index
    %c0_15 = arith.constant 0 : index
    %c2 = arith.constant 2 : index
    %c0_16 = arith.constant 0 : index
    %15 = vector.load %arg1[%c0_14, %c0_15, %c2, %c0_16] : memref<1x10x10x36xbf16, #tpu.memory_space<vmem>>, vector<1x8x8x36xbf16>
    %16 = vector.shape_cast %15 : vector<1x8x8x36xbf16> to vector<8x8x36xbf16>
    %17 = vector.shape_cast %16 : vector<8x8x36xbf16> to vector<64x36xbf16>
    %c2_17 = arith.constant 2 : index
    %c0_18 = arith.constant 0 : index
    %c0_19 = arith.constant 0 : index
    %18 = vector.load %arg3[%c2_17, %c0_18, %c0_19] : memref<9x36x128xbf16, #tpu.memory_space<vmem>>, vector<1x36x128xbf16>
    %19 = vector.shape_cast %18 : vector<1x36x128xbf16> to vector<36x128xbf16>
    %cst_20 = arith.constant dense<0.000000e+00> : vector<64x128xf32>
    %20 = tpu.matmul %17, %19, %cst_20 {dimension_numbers = #tpu.dot_dimension_numbers<[1], [0], [0], [1], [0, 0, 1, 1], [], []>} : vector<64x36xbf16>, vector<36x128xbf16>, vector<64x128xf32> -> vector<64x128xf32>
    %21 = arith.addf %14, %20 : vector<64x128xf32>
    %c0_21 = arith.constant 0 : index
    %c1_22 = arith.constant 1 : index
    %c0_23 = arith.constant 0 : index
    %c0_24 = arith.constant 0 : index
    %22 = vector.load %arg1[%c0_21, %c1_22, %c0_23, %c0_24] : memref<1x10x10x36xbf16, #tpu.memory_space<vmem>>, vector<1x8x8x36xbf16>
    %23 = vector.shape_cast %22 : vector<1x8x8x36xbf16> to vector<8x8x36xbf16>
    %24 = vector.shape_cast %23 : vector<8x8x36xbf16> to vector<64x36xbf16>
    %c3 = arith.constant 3 : index
    %c0_25 = arith.constant 0 : index
    %c0_26 = arith.constant 0 : index
    %25 = vector.load %arg3[%c3, %c0_25, %c0_26] : memref<9x36x128xbf16, #tpu.memory_space<vmem>>, vector<1x36x128xbf16>
    %26 = vector.shape_cast %25 : vector<1x36x128xbf16> to vector<36x128xbf16>
    %cst_27 = arith.constant dense<0.000000e+00> : vector<64x128xf32>
    %27 = tpu.matmul %24, %26, %cst_27 {dimension_numbers = #tpu.dot_dimension_numbers<[1], [0], [0], [1], [0, 0, 1, 1], [], []>} : vector<64x36xbf16>, vector<36x128xbf16>, vector<64x128xf32> -> vector<64x128xf32>
    %28 = arith.addf %21, %27 : vector<64x128xf32>
    %c0_28 = arith.constant 0 : index
    %c1_29 = arith.constant 1 : index
    %c1_30 = arith.constant 1 : index
    %c0_31 = arith.constant 0 : index
    %29 = vector.load %arg1[%c0_28, %c1_29, %c1_30, %c0_31] : memref<1x10x10x36xbf16, #tpu.memory_space<vmem>>, vector<1x8x8x36xbf16>
    %30 = vector.shape_cast %29 : vector<1x8x8x36xbf16> to vector<8x8x36xbf16>
    %31 = vector.shape_cast %30 : vector<8x8x36xbf16> to vector<64x36xbf16>
    %c4 = arith.constant 4 : index
    %c0_32 = arith.constant 0 : index
    %c0_33 = arith.constant 0 : index
    %32 = vector.load %arg3[%c4, %c0_32, %c0_33] : memref<9x36x128xbf16, #tpu.memory_space<vmem>>, vector<1x36x128xbf16>
    %33 = vector.shape_cast %32 : vector<1x36x128xbf16> to vector<36x128xbf16>
    %cst_34 = arith.constant dense<0.000000e+00> : vector<64x128xf32>
    %34 = tpu.matmul %31, %33, %cst_34 {dimension_numbers = #tpu.dot_dimension_numbers<[1], [0], [0], [1], [0, 0, 1, 1], [], []>} : vector<64x36xbf16>, vector<36x128xbf16>, vector<64x128xf32> -> vector<64x128xf32>
    %35 = arith.addf %28, %34 : vector<64x128xf32>
    %c0_35 = arith.constant 0 : index
    %c1_36 = arith.constant 1 : index
    %c2_37 = arith.constant 2 : index
    %c0_38 = arith.constant 0 : index
    %36 = vector.load %arg1[%c0_35, %c1_36, %c2_37, %c0_38] : memref<1x10x10x36xbf16, #tpu.memory_space<vmem>>, vector<1x8x8x36xbf16>
    %37 = vector.shape_cast %36 : vector<1x8x8x36xbf16> to vector<8x8x36xbf16>
    %38 = vector.shape_cast %37 : vector<8x8x36xbf16> to vector<64x36xbf16>
    %c5 = arith.constant 5 : index
    %c0_39 = arith.constant 0 : index
    %c0_40 = arith.constant 0 : index
    %39 = vector.load %arg3[%c5, %c0_39, %c0_40] : memref<9x36x128xbf16, #tpu.memory_space<vmem>>, vector<1x36x128xbf16>
    %40 = vector.shape_cast %39 : vector<1x36x128xbf16> to vector<36x128xbf16>
    %cst_41 = arith.constant dense<0.000000e+00> : vector<64x128xf32>
    %41 = tpu.matmul %38, %40, %cst_41 {dimension_numbers = #tpu.dot_dimension_numbers<[1], [0], [0], [1], [0, 0, 1, 1], [], []>} : vector<64x36xbf16>, vector<36x128xbf16>, vector<64x128xf32> -> vector<64x128xf32>
    %42 = arith.addf %35, %41 : vector<64x128xf32>
    %c0_42 = arith.constant 0 : index
    %c2_43 = arith.constant 2 : index
    %c0_44 = arith.constant 0 : index
    %c0_45 = arith.constant 0 : index
    %43 = vector.load %arg1[%c0_42, %c2_43, %c0_44, %c0_45] : memref<1x10x10x36xbf16, #tpu.memory_space<vmem>>, vector<1x8x8x36xbf16>
    %44 = vector.shape_cast %43 : vector<1x8x8x36xbf16> to vector<8x8x36xbf16>
    %45 = vector.shape_cast %44 : vector<8x8x36xbf16> to vector<64x36xbf16>
    %c6 = arith.constant 6 : index
    %c0_46 = arith.constant 0 : index
    %c0_47 = arith.constant 0 : index
    %46 = vector.load %arg3[%c6, %c0_46, %c0_47] : memref<9x36x128xbf16, #tpu.memory_space<vmem>>, vector<1x36x128xbf16>
    %47 = vector.shape_cast %46 : vector<1x36x128xbf16> to vector<36x128xbf16>
    %cst_48 = arith.constant dense<0.000000e+00> : vector<64x128xf32>
    %48 = tpu.matmul %45, %47, %cst_48 {dimension_numbers = #tpu.dot_dimension_numbers<[1], [0], [0], [1], [0, 0, 1, 1], [], []>} : vector<64x36xbf16>, vector<36x128xbf16>, vector<64x128xf32> -> vector<64x128xf32>
    %49 = arith.addf %42, %48 : vector<64x128xf32>
    %c0_49 = arith.constant 0 : index
    %c2_50 = arith.constant 2 : index
    %c1_51 = arith.constant 1 : index
    %c0_52 = arith.constant 0 : index
    %50 = vector.load %arg1[%c0_49, %c2_50, %c1_51, %c0_52] : memref<1x10x10x36xbf16, #tpu.memory_space<vmem>>, vector<1x8x8x36xbf16>
    %51 = vector.shape_cast %50 : vector<1x8x8x36xbf16> to vector<8x8x36xbf16>
    %52 = vector.shape_cast %51 : vector<8x8x36xbf16> to vector<64x36xbf16>
    %c7 = arith.constant 7 : index
    %c0_53 = arith.constant 0 : index
    %c0_54 = arith.constant 0 : index
    %53 = vector.load %arg3[%c7, %c0_53, %c0_54] : memref<9x36x128xbf16, #tpu.memory_space<vmem>>, vector<1x36x128xbf16>
    %54 = vector.shape_cast %53 : vector<1x36x128xbf16> to vector<36x128xbf16>
    %cst_55 = arith.constant dense<0.000000e+00> : vector<64x128xf32>
    %55 = tpu.matmul %52, %54, %cst_55 {dimension_numbers = #tpu.dot_dimension_numbers<[1], [0], [0], [1], [0, 0, 1, 1], [], []>} : vector<64x36xbf16>, vector<36x128xbf16>, vector<64x128xf32> -> vector<64x128xf32>
    %56 = arith.addf %49, %55 : vector<64x128xf32>
    %c0_56 = arith.constant 0 : index
    %c2_57 = arith.constant 2 : index
    %c2_58 = arith.constant 2 : index
    %c0_59 = arith.constant 0 : index
    %57 = vector.load %arg1[%c0_56, %c2_57, %c2_58, %c0_59] : memref<1x10x10x36xbf16, #tpu.memory_space<vmem>>, vector<1x8x8x36xbf16>
    %58 = vector.shape_cast %57 : vector<1x8x8x36xbf16> to vector<8x8x36xbf16>
    %59 = vector.shape_cast %58 : vector<8x8x36xbf16> to vector<64x36xbf16>
    %c8 = arith.constant 8 : index
    %c0_60 = arith.constant 0 : index
    %c0_61 = arith.constant 0 : index
    %60 = vector.load %arg3[%c8, %c0_60, %c0_61] : memref<9x36x128xbf16, #tpu.memory_space<vmem>>, vector<1x36x128xbf16>
    %61 = vector.shape_cast %60 : vector<1x36x128xbf16> to vector<36x128xbf16>
    %cst_62 = arith.constant dense<0.000000e+00> : vector<64x128xf32>
    %62 = tpu.matmul %59, %61, %cst_62 {dimension_numbers = #tpu.dot_dimension_numbers<[1], [0], [0], [1], [0, 0, 1, 1], [], []>} : vector<64x36xbf16>, vector<36x128xbf16>, vector<64x128xf32> -> vector<64x128xf32>
    %63 = arith.addf %56, %62 : vector<64x128xf32>
    %c0_63 = arith.constant 0 : index
    %c0_64 = arith.constant 0 : index
    %64 = vector.load %arg4[%c0_63, %c0_64] : memref<1x128xf32, #tpu.memory_space<vmem>>, vector<1x128xf32>
    %65 = vector.broadcast %64 : vector<1x128xf32> to vector<64x128xf32>
    %66 = arith.addf %63, %65 : vector<64x128xf32>
    %c0_65 = arith.constant 0 : index
    %c0_66 = arith.constant 0 : index
    %c0_67 = arith.constant 0 : index
    %67 = vector.load %arg2[%c0_65, %c0_66, %c0_67] : memref<1x64x32xf32, #tpu.memory_space<vmem>>, vector<1x64x32xf32>
    %68 = vector.shape_cast %67 : vector<1x64x32xf32> to vector<64x32xf32>
    %69 = vector.extract_strided_slice %66 {offsets = [0, 0], sizes = [64, 32], strides = [1, 1]} : vector<64x128xf32> to vector<64x32xf32>
    %70 = vector.extract_strided_slice %66 {offsets = [0, 32], sizes = [64, 32], strides = [1, 1]} : vector<64x128xf32> to vector<64x32xf32>
    %71 = vector.extract_strided_slice %66 {offsets = [0, 64], sizes = [64, 32], strides = [1, 1]} : vector<64x128xf32> to vector<64x32xf32>
    %72 = vector.extract_strided_slice %66 {offsets = [0, 96], sizes = [64, 32], strides = [1, 1]} : vector<64x128xf32> to vector<64x32xf32>
    %c0_68 = arith.constant 0 : index
    %c0_69 = arith.constant 0 : index
    %73 = vector.load %arg5[%c0_68, %c0_69] : memref<64x32xf32, #tpu.memory_space<vmem>>, vector<64x32xf32>
    %74 = arith.mulf %68, %73 : vector<64x32xf32>
    %75 = arith.addf %69, %74 : vector<64x32xf32>
    %cst_70 = arith.constant 0.000000e+00 : f32
    %76 = vector.broadcast %cst_70 : f32 to vector<64x32xf32>
    %77 = arith.subf %76, %75 : vector<64x32xf32>
    %78 = math.exp %77 : vector<64x32xf32>
    %cst_71 = arith.constant 1.000000e+00 : f32
    %79 = vector.broadcast %cst_71 : f32 to vector<64x32xf32>
    %80 = arith.addf %79, %78 : vector<64x32xf32>
    %cst_72 = arith.constant 1.000000e+00 : f32
    %81 = vector.broadcast %cst_72 : f32 to vector<64x32xf32>
    %82 = arith.divf %81, %80 : vector<64x32xf32>
    %c0_73 = arith.constant 0 : index
    %c0_74 = arith.constant 0 : index
    %83 = vector.load %arg6[%c0_73, %c0_74] : memref<64x32xf32, #tpu.memory_space<vmem>>, vector<64x32xf32>
    %84 = arith.mulf %68, %83 : vector<64x32xf32>
    %85 = arith.addf %70, %84 : vector<64x32xf32>
    %cst_75 = arith.constant 0.000000e+00 : f32
    %86 = vector.broadcast %cst_75 : f32 to vector<64x32xf32>
    %87 = arith.subf %86, %85 : vector<64x32xf32>
    %88 = math.exp %87 : vector<64x32xf32>
    %cst_76 = arith.constant 1.000000e+00 : f32
    %89 = vector.broadcast %cst_76 : f32 to vector<64x32xf32>
    %90 = arith.addf %89, %88 : vector<64x32xf32>
    %cst_77 = arith.constant 1.000000e+00 : f32
    %91 = vector.broadcast %cst_77 : f32 to vector<64x32xf32>
    %92 = arith.divf %91, %90 : vector<64x32xf32>
    %93 = arith.mulf %92, %68 : vector<64x32xf32>
    %94 = math.tanh %72 : vector<64x32xf32>
    %95 = arith.mulf %82, %94 : vector<64x32xf32>
    %96 = arith.addf %93, %95 : vector<64x32xf32>
    %c0_78 = arith.constant 0 : index
    %c0_79 = arith.constant 0 : index
    %97 = vector.load %arg7[%c0_78, %c0_79] : memref<64x32xf32, #tpu.memory_space<vmem>>, vector<64x32xf32>
    %98 = arith.mulf %68, %97 : vector<64x32xf32>
    %99 = arith.addf %71, %98 : vector<64x32xf32>
    %cst_80 = arith.constant 0.000000e+00 : f32
    %100 = vector.broadcast %cst_80 : f32 to vector<64x32xf32>
    %101 = arith.subf %100, %99 : vector<64x32xf32>
    %102 = math.exp %101 : vector<64x32xf32>
    %cst_81 = arith.constant 1.000000e+00 : f32
    %103 = vector.broadcast %cst_81 : f32 to vector<64x32xf32>
    %104 = arith.addf %103, %102 : vector<64x32xf32>
    %cst_82 = arith.constant 1.000000e+00 : f32
    %105 = vector.broadcast %cst_82 : f32 to vector<64x32xf32>
    %106 = arith.divf %105, %104 : vector<64x32xf32>
    %107 = math.tanh %96 : vector<64x32xf32>
    %108 = arith.mulf %106, %107 : vector<64x32xf32>
    %c0_83 = arith.constant 0 : index
    %c0_84 = arith.constant 0 : index
    %c0_85 = arith.constant 0 : index
    %109 = vector.load %arg8[%c0_83, %c0_84, %c0_85] : memref<1x64x32xf32, #tpu.memory_space<vmem>>, vector<1x64x32xf32>
    %110 = vector.shape_cast %109 : vector<1x64x32xf32> to vector<64x32xf32>
    %111 = vector.shape_cast %108 : vector<64x32xf32> to vector<1x64x32xf32>
    tpu.vector_store %arg8[%c0_83, %c0_84, %c0_85], %111 {strides = array<i32>} : memref<1x64x32xf32, #tpu.memory_space<vmem>>, vector<1x64x32xf32>,
    %c0_86 = arith.constant 0 : index
    %c0_87 = arith.constant 0 : index
    %c0_88 = arith.constant 0 : index
    %112 = vector.load %arg9[%c0_86, %c0_87, %c0_88] : memref<1x64x32xf32, #tpu.memory_space<vmem>>, vector<1x64x32xf32>
    %113 = vector.shape_cast %112 : vector<1x64x32xf32> to vector<64x32xf32>
    %114 = vector.shape_cast %96 : vector<64x32xf32> to vector<1x64x32xf32>
    tpu.vector_store %arg9[%c0_86, %c0_87, %c0_88], %114 {strides = array<i32>} : memref<1x64x32xf32, #tpu.memory_space<vmem>>, vector<1x64x32xf32>,
    return
  }
  func.func @transform_0(%arg0: i32) -> (i32, i32, i32, i32) {
    %c0_i32 = arith.constant 0 : i32
    %c0_i32_0 = arith.constant 0 : i32
    %c0_i32_1 = arith.constant 0 : i32
    %c0_i32_2 = arith.constant 0 : i32
    return %arg0, %c0_i32, %c0_i32_0, %c0_i32_1 : i32, i32, i32, i32
  }
  func.func @transform_1(%arg0: i32) -> (i32, i32, i32) {
    %c0_i32 = arith.constant 0 : i32
    %c0_i32_0 = arith.constant 0 : i32
    %c0_i32_1 = arith.constant 0 : i32
    return %arg0, %c0_i32, %c0_i32_0 : i32, i32, i32
  }
  func.func @transform_2(%arg0: i32) -> (i32, i32, i32) {
    %c0_i32 = arith.constant 0 : i32
    %c0_i32_0 = arith.constant 0 : i32
    %c0_i32_1 = arith.constant 0 : i32
    %c0_i32_2 = arith.constant 0 : i32
    return %c0_i32, %c0_i32_0, %c0_i32_1 : i32, i32, i32
  }
  func.func @transform_3(%arg0: i32) -> (i32, i32) {
    %c0_i32 = arith.constant 0 : i32
    %c0_i32_0 = arith.constant 0 : i32
    %c0_i32_1 = arith.constant 0 : i32
    return %c0_i32, %c0_i32_0 : i32, i32
  }
  func.func @transform_4(%arg0: i32) -> (i32, i32) {
    %c0_i32 = arith.constant 0 : i32
    %c0_i32_0 = arith.constant 0 : i32
    %c0_i32_1 = arith.constant 0 : i32
    return %c0_i32, %c0_i32_0 : i32, i32
  }
  func.func @transform_5(%arg0: i32) -> (i32, i32) {
    %c0_i32 = arith.constant 0 : i32
    %c0_i32_0 = arith.constant 0 : i32
    %c0_i32_1 = arith.constant 0 : i32
    return %c0_i32, %c0_i32_0 : i32, i32
  }
  func.func @transform_6(%arg0: i32) -> (i32, i32) {
    %c0_i32 = arith.constant 0 : i32
    %c0_i32_0 = arith.constant 0 : i32
    %c0_i32_1 = arith.constant 0 : i32
    return %c0_i32, %c0_i32_0 : i32, i32
  }
  func.func @transform_7(%arg0: i32) -> (i32, i32, i32) {
    %c0_i32 = arith.constant 0 : i32
    %c0_i32_0 = arith.constant 0 : i32
    %c0_i32_1 = arith.constant 0 : i32
    return %arg0, %c0_i32, %c0_i32_0 : i32, i32, i32
  }
  func.func @transform_8(%arg0: i32) -> (i32, i32, i32) {
    %c0_i32 = arith.constant 0 : i32
    %c0_i32_0 = arith.constant 0 : i32
    %c0_i32_1 = arith.constant 0 : i32
    return %arg0, %c0_i32, %c0_i32_0 : i32, i32, i32
  }
}

</mosaic_0001>

<llo_original>
// kernel: conv_lstm_cell.1
$region0: #{conv_lstm_cell.1}
  #allocation0 [shape = 'u32[]', space=smem, size = 0x4, offset = 0x4, fixed_abs, tag = 'smem constant byte address 0x4 - core index']
  #allocation1 [shape = 'u32[144,128]{1,0:T(1,128)}', space=vmem, size = 0x12000, scoped, tag = 'internal scratch']
  %s0 = inlined_call_operand.vmem [shape: bf16[2,10,10,36], index: 0, kind: input, shape index: {}]
  %s1 = inlined_call_operand.vmem [shape: f32[2,64,32], index: 1, kind: input, shape index: {}]
  %s2 = inlined_call_operand.vmem [shape: bf16[9,36,128], index: 2, kind: input, shape index: {}]
  %s3 = inlined_call_operand.vmem [shape: f32[1,128], index: 3, kind: input, shape index: {}]
  %s4 = inlined_call_operand.vmem [shape: f32[64,32], index: 4, kind: input, shape index: {}]
  %s5 = inlined_call_operand.vmem [shape: f32[64,32], index: 5, kind: input, shape index: {}]
  %s6 = inlined_call_operand.vmem [shape: f32[64,32], index: 6, kind: input, shape index: {}]
  %s7 = inlined_call_operand.hbm [shape: f32[2,64,32], index: 7, kind: output, shape index: {0}]
  %s8 = inlined_call_operand.hbm [shape: f32[2,64,32], index: 8, kind: output, shape index: {1}]
  %9 = xla_tuple %s7, %s8
  %s10 = sld [smem:[#allocation0]]
  $region69: #{conv_lstm_cell.1} parent=0
    _
  %s12 = ssub.s32 1, %s10
  %s13 = scalar_select 0, %s12, %s10
  $region1: #{conv_lstm_cell.1} parent=0
    #allocation2 [shape = 'u8[65536]{0}', space=vmem, size = 0x10000, scoped, tag = 'output window, operand 0']
    #allocation3 [shape = 's32[2]{0}', space=sflag, size = 0x8, scoped, tag = 'scoped memory for conv_lstm_cell.1']
    #allocation4 [shape = 'u8[65536]{0}', space=vmem, size = 0x10000, scoped, tag = 'output window, operand 1']
    #allocation5 [shape = 's32[2]{0}', space=sflag, size = 0x8, scoped, tag = 'scoped memory for conv_lstm_cell.1']
    %14 = vsyncpa [#allocation3], 0
    %s15 = scalar_lea.sflag [#allocation3], 1
    %16 = vsyncpa %s15, 0
    %17 = vsyncpa [#allocation5], 0
    %s18 = scalar_lea.sflag [#allocation5], 1
    %19 = vsyncpa %s18, 0
    loop: start=0, step=1, limit=4
    $region2: #{conv_lstm_cell.1} parent=1 // loop_pre_header
      _
    $region3: #{conv_lstm_cell.1} parent=1 // loop_header
      %s21 = sphi 0, %s25
      %p22 = scmp.ge.s32.totalorder %s21, 4
      %s31 = sphi 0, %s33
      %s34 = sphi 0, %s31
      %s35 = sphi 0, %s34
      %s51 = sphi 0, %s35
      %s57 = sphi 0, %s59
      %s60 = sphi 0, %s57
      %s61 = sphi 0, %s60
      %s77 = sphi 0, %s61
      %s81 = sphi 0, %s81
      %s83 = sphi 0, %s81
      %s84 = sphi 0, %s83
      %s98 = sphi 0, %s84
      %s102 = sphi 0, %s102
      %s104 = sphi 0, %s102
      %s105 = sphi 0, %s104
      %s119 = sphi 0, %s105
      %s123 = sphi 0, %s123
      %s125 = sphi 0, %s123
      %s126 = sphi 0, %s125
      %s140 = sphi 0, %s126
      %s144 = sphi 0, %s144
      %s146 = sphi 0, %s144
      %s147 = sphi 0, %s146
      %s161 = sphi 0, %s147
      %s165 = sphi 0, %s165
      %s167 = sphi 0, %s165
      %s168 = sphi 0, %s167
      %s182 = sphi 0, %s168
      %s188 = sphi 0, %s190
      %s191 = sphi 0, %s188
      %s192 = sphi 0, %s191
      %s208 = sphi 0, %s192
      %s214 = sphi 0, %s216
      %s217 = sphi 0, %s214
      %s218 = sphi 0, %s217
      %s234 = sphi 0, %s218
    $region4: #{conv_lstm_cell.1} parent=1 // loop_header_branch
      %24 = sbr.rel (%p22) target = $region8
    $region5: #{conv_lstm_cell.1} parent=1 // loop_body
      %s26 = ssub.s32 %s21, 1
      %s27 = ssub.s32 %s21, 2
      %s28 = sadd.s32 %s21, 1
      %s29 = ssub.s32 %s21, %s28
      %p30 = scmp.eq.s32.totalorder %s29, 0
      %s32 = sadd.s32 %s31, 1
      %s33 = scalar_select %p30, %s31, %s32
      %p36 = pneg %p30
      %p37 = scmp.eq.s32.totalorder %s21, 1
      %p38 = por %p36, %p37
      %p39 = scmp.ne.s32.totalorder %s31, %s34
      %p40 = scmp.eq.s32.totalorder %s21, 0
      %p41 = por %p39, %p40
      %p42 = scmp.ne.s32.totalorder %s31, %s34
      %p43 = scmp.eq.s32.totalorder %s26, 1
      %p44 = por %p42, %p43
      %p45 = scmp.ne.s32.totalorder %s34, %s35
      %p46 = scmp.eq.s32.totalorder %s26, 0
      %p47 = por %p45, %p46
      %p48 = scmp.ne.s32.totalorder %s34, %s35
      %p49 = scmp.eq.s32.totalorder %s27, 1
      %p50 = por %p48, %p49
      %p52 = scmp.ne.s32.totalorder %s35, %s51
      %p53 = scmp.eq.s32.totalorder %s27, 0
      %p54 = por %p52, %p53
      %s55 = ssub.s32 %s21, %s28
      %p56 = scmp.eq.s32.totalorder %s55, 0
      %s58 = sadd.s32 %s57, 1
      %s59 = scalar_select %p56, %s57, %s58
      %p62 = pneg %p56
      %p63 = scmp.eq.s32.totalorder %s21, 1
      %p64 = por %p62, %p63
      %p65 = scmp.ne.s32.totalorder %s57, %s60
      %p66 = scmp.eq.s32.totalorder %s21, 0
      %p67 = por %p65, %p66
      %p68 = scmp.ne.s32.totalorder %s57, %s60
      %p69 = scmp.eq.s32.totalorder %s26, 1
      %p70 = por %p68, %p69
      %p71 = scmp.ne.s32.totalorder %s60, %s61
      %p72 = scmp.eq.s32.totalorder %s26, 0
      %p73 = por %p71, %p72
      %p74 = scmp.ne.s32.totalorder %s60, %s61
      %p75 = scmp.eq.s32.totalorder %s27, 1
      %p76 = por %p74, %p75
      %p78 = scmp.ne.s32.totalorder %s61, %s77
      %p79 = scmp.eq.s32.totalorder %s27, 0
      %p80 = por %p78, %p79
      %s82 = sadd.s32 %s81, 1
      %p85 = scmp.eq.s32.totalorder %s21, 1
      %p86 = scmp.ne.s32.totalorder %s81, %s83
      %p87 = scmp.eq.s32.totalorder %s21, 0
      %p88 = por %p86, %p87
      %p89 = scmp.ne.s32.totalorder %s81, %s83
      %p90 = scmp.eq.s32.totalorder %s26, 1
      %p91 = por %p89, %p90
      %p92 = scmp.ne.s32.totalorder %s83, %s84
      %p93 = scmp.eq.s32.totalorder %s26, 0
      %p94 = por %p92, %p93
      %p95 = scmp.ne.s32.totalorder %s83, %s84
      %p96 = scmp.eq.s32.totalorder %s27, 1
      %p97 = por %p95, %p96
      %p99 = scmp.ne.s32.totalorder %s84, %s98
      %p100 = scmp.eq.s32.totalorder %s27, 0
      %p101 = por %p99, %p100
      %s103 = sadd.s32 %s102, 1
      %p106 = scmp.eq.s32.totalorder %s21, 1
      %p107 = scmp.ne.s32.totalorder %s102, %s104
      %p108 = scmp.eq.s32.totalorder %s21, 0
      %p109 = por %p107, %p108
      %p110 = scmp.ne.s32.totalorder %s102, %s104
      %p111 = scmp.eq.s32.totalorder %s26, 1
      %p112 = por %p110, %p111
      %p113 = scmp.ne.s32.totalorder %s104, %s105
      %p114 = scmp.eq.s32.totalorder %s26, 0
      %p115 = por %p113, %p114
      %p116 = scmp.ne.s32.totalorder %s104, %s105
      %p117 = scmp.eq.s32.totalorder %s27, 1
      %p118 = por %p116, %p117
      %p120 = scmp.ne.s32.totalorder %s105, %s119
      %p121 = scmp.eq.s32.totalorder %s27, 0
      %p122 = por %p120, %p121
      %s124 = sadd.s32 %s123, 1
      %p127 = scmp.eq.s32.totalorder %s21, 1
      %p128 = scmp.ne.s32.totalorder %s123, %s125
      %p129 = scmp.eq.s32.totalorder %s21, 0
      %p130 = por %p128, %p129
      %p131 = scmp.ne.s32.totalorder %s123, %s125
      %p132 = scmp.eq.s32.totalorder %s26, 1
      %p133 = por %p131, %p132
      %p134 = scmp.ne.s32.totalorder %s125, %s126
      %p135 = scmp.eq.s32.totalorder %s26, 0
      %p136 = por %p134, %p135
      %p137 = scmp.ne.s32.totalorder %s125, %s126
      %p138 = scmp.eq.s32.totalorder %s27, 1
      %p139 = por %p137, %p138
      %p141 = scmp.ne.s32.totalorder %s126, %s140
      %p142 = scmp.eq.s32.totalorder %s27, 0
      %p143 = por %p141, %p142
      %s145 = sadd.s32 %s144, 1
      %p148 = scmp.eq.s32.totalorder %s21, 1
      %p149 = scmp.ne.s32.totalorder %s144, %s146
      %p150 = scmp.eq.s32.totalorder %s21, 0
      %p151 = por %p149, %p150
      %p152 = scmp.ne.s32.totalorder %s144, %s146
      %p153 = scmp.eq.s32.totalorder %s26, 1
      %p154 = por %p152, %p153
      %p155 = scmp.ne.s32.totalorder %s146, %s147
      %p156 = scmp.eq.s32.totalorder %s26, 0
      %p157 = por %p155, %p156
      %p158 = scmp.ne.s32.totalorder %s146, %s147
      %p159 = scmp.eq.s32.totalorder %s27, 1
      %p160 = por %p158, %p159
      %p162 = scmp.ne.s32.totalorder %s147, %s161
      %p163 = scmp.eq.s32.totalorder %s27, 0
      %p164 = por %p162, %p163
      %s166 = sadd.s32 %s165, 1
      %p169 = scmp.eq.s32.totalorder %s21, 1
      %p170 = scmp.ne.s32.totalorder %s165, %s167
      %p171 = scmp.eq.s32.totalorder %s21, 0
      %p172 = por %p170, %p171
      %p173 = scmp.ne.s32.totalorder %s165, %s167
      %p174 = scmp.eq.s32.totalorder %s26, 1
      %p175 = por %p173, %p174
      %p176 = scmp.ne.s32.totalorder %s167, %s168
      %p177 = scmp.eq.s32.totalorder %s26, 0
      %p178 = por %p176, %p177
      %p179 = scmp.ne.s32.totalorder %s167, %s168
      %p180 = scmp.eq.s32.totalorder %s27, 1
      %p181 = por %p179, %p180
      %p183 = scmp.ne.s32.totalorder %s168, %s182
      %p184 = scmp.eq.s32.totalorder %s27, 0
      %p185 = por %p183, %p184
      %s186 = ssub.s32 %s21, %s28
      %p187 = scmp.eq.s32.totalorder %s186, 0
      %s189 = sadd.s32 %s188, 1
      %s190 = scalar_select %p187, %s188, %s189
      %p193 = pneg %p187
      %p194 = scmp.eq.s32.totalorder %s21, 1
      %p195 = por %p193, %p194
      %p196 = scmp.ne.s32.totalorder %s188, %s191
      %p197 = scmp.eq.s32.totalorder %s21, 0
      %p198 = por %p196, %p197
      %p199 = scmp.ne.s32.totalorder %s188, %s191
      %p200 = scmp.eq.s32.totalorder %s26, 1
      %p201 = por %p199, %p200
      %p202 = scmp.ne.s32.totalorder %s191, %s192
      %p203 = scmp.eq.s32.totalorder %s26, 0
      %p204 = por %p202, %p203
      %p205 = scmp.ne.s32.totalorder %s191, %s192
      %p206 = scmp.eq.s32.totalorder %s27, 1
      %p207 = por %p205, %p206
      %p209 = scmp.ne.s32.totalorder %s192, %s208
      %p210 = scmp.eq.s32.totalorder %s27, 0
      %p211 = por %p209, %p210
      %s212 = ssub.s32 %s21, %s28
      %p213 = scmp.eq.s32.totalorder %s212, 0
      %s215 = sadd.s32 %s214, 1
      %s216 = scalar_select %p213, %s214, %s215
      %p219 = pneg %p213
      %p220 = scmp.eq.s32.totalorder %s21, 1
      %p221 = por %p219, %p220
      %p222 = scmp.ne.s32.totalorder %s214, %s217
      %p223 = scmp.eq.s32.totalorder %s21, 0
      %p224 = por %p222, %p223
      %p225 = scmp.ne.s32.totalorder %s214, %s217
      %p226 = scmp.eq.s32.totalorder %s26, 1
      %p227 = por %p225, %p226
      %p228 = scmp.ne.s32.totalorder %s217, %s218
      %p229 = scmp.eq.s32.totalorder %s26, 0
      %p230 = por %p228, %p229
      %p231 = scmp.ne.s32.totalorder %s217, %s218
      %p232 = scmp.eq.s32.totalorder %s27, 1
      %p233 = por %p231, %p232
      %p235 = scmp.ne.s32.totalorder %s218, %s234
      %p236 = scmp.eq.s32.totalorder %s27, 0
      %p237 = por %p235, %p236
      %p238 = scmp.le.s32.totalorder 1, %s21
      %p239 = scmp.lt.s32.totalorder %s21, 3
      %p240 = pnand %p238, %p239
      %p241 = pneg %p240
      // Predicated region
      $region9: #{conv_lstm_cell.1} parent=5 // pred_check
        _
      $region10: #{conv_lstm_cell.1} parent=5 // pred_check_branch
        %243 = sbr.rel (%p240) target = $region12
      $region11: #{conv_lstm_cell.1} parent=5 // pred_region
        %s244 = ssub.s32 %s21, 1
        // Predicated region
        $region13: #{conv_lstm_cell.1} parent=11 // pred_check
          %p245 = pneg %p94
        $region14: #{conv_lstm_cell.1} parent=11 // pred_check_branch
          %247 = sbr.rel (%p245) target = $region16
        $region15: #{conv_lstm_cell.1} parent=11 // pred_region
          _
        $region16: #{conv_lstm_cell.1} parent=11 // pred_fallthru
          _
        // Predicated region
        $region17: #{conv_lstm_cell.1} parent=11 // pred_check
          %p248 = pneg %p115
        $region18: #{conv_lstm_cell.1} parent=11 // pred_check_branch
          %250 = sbr.rel (%p248) target = $region20
        $region19: #{conv_lstm_cell.1} parent=11 // pred_region
          _
        $region20: #{conv_lstm_cell.1} parent=11 // pred_fallthru
          _
        // Predicated region
        $region21: #{conv_lstm_cell.1} parent=11 // pred_check
          %p251 = pneg %p136
        $region22: #{conv_lstm_cell.1} parent=11 // pred_check_branch
          %253 = sbr.rel (%p251) target = $region24
        $region23: #{conv_lstm_cell.1} parent=11 // pred_region
          _
        $region24: #{conv_lstm_cell.1} parent=11 // pred_fallthru
          _
        // Predicated region
        $region25: #{conv_lstm_cell.1} parent=11 // pred_check
          %p254 = pneg %p157
        $region26: #{conv_lstm_cell.1} parent=11 // pred_check_branch
          %256 = sbr.rel (%p254) target = $region28
        $region27: #{conv_lstm_cell.1} parent=11 // pred_region
          _
        $region28: #{conv_lstm_cell.1} parent=11 // pred_fallthru
          _
        // Predicated region
        $region29: #{conv_lstm_cell.1} parent=11 // pred_check
          %p257 = pneg %p178
        $region30: #{conv_lstm_cell.1} parent=11 // pred_check_branch
          %259 = sbr.rel (%p257) target = $region32
        $region31: #{conv_lstm_cell.1} parent=11 // pred_region
          _
        $region32: #{conv_lstm_cell.1} parent=11 // pred_fallthru
          _
      $region12: #{conv_lstm_cell.1} parent=5 // pred_fallthru
        _
      %p260 = scmp.lt.s32.totalorder %s21, 2
      // Predicated region
      $region33: #{conv_lstm_cell.1} parent=5 // pred_check
        %p261 = pneg %p260
      $region34: #{conv_lstm_cell.1} parent=5 // pred_check_branch
        %263 = sbr.rel (%p261) target = $region36
      $region35: #{conv_lstm_cell.1} parent=5 // pred_region
        // Predicated region
        $region37: #{conv_lstm_cell.1} parent=35 // pred_check
          %p264 = pneg %p41
        $region38: #{conv_lstm_cell.1} parent=35 // pred_check_branch
          %266 = sbr.rel (%p264) target = $region40
        $region39: #{conv_lstm_cell.1} parent=35 // pred_region
          %p267 = scmp.lt.s32.totalorder %s21, 1
          %s268 = scalar_select %p267, %s21, 1
          %s269 = smul.addr %s268, 20
          %s270 = smul.addr %s269, 4
          %s271 = scalar_lea.vmem %s0, %s270
        $region40: #{conv_lstm_cell.1} parent=35 // pred_fallthru
          _
        // Predicated region
        $region41: #{conv_lstm_cell.1} parent=35 // pred_check
          %p272 = pneg %p67
        $region42: #{conv_lstm_cell.1} parent=35 // pred_check_branch
          %274 = sbr.rel (%p272) target = $region44
        $region43: #{conv_lstm_cell.1} parent=35 // pred_region
          %p275 = scmp.lt.s32.totalorder %s21, 1
          %s276 = scalar_select %p275, %s21, 1
          %s277 = smul.addr %s276, 8
          %s278 = smul.addr %s277, 8
          %s279 = scalar_lea.vmem %s1, %s278
        $region44: #{conv_lstm_cell.1} parent=35 // pred_fallthru
          _
      $region36: #{conv_lstm_cell.1} parent=5 // pred_fallthru
        _
      %p280 = scmp.le.s32.totalorder 1, %s21
      %p281 = scmp.lt.s32.totalorder %s21, 3
      %p282 = pnand %p280, %p281
      %p283 = pneg %p282
      // Predicated region
      $region45: #{conv_lstm_cell.1} parent=5 // pred_check
        _
      $region46: #{conv_lstm_cell.1} parent=5 // pred_check_branch
        %285 = sbr.rel (%p282) target = $region48
      $region47: #{conv_lstm_cell.1} parent=5 // pred_region
        %s286 = ssub.s32 %s21, 1
        %p287 = scmp.lt.s32.totalorder %s26, 1
        %s288 = scalar_select %p287, %s26, 1
        %s289 = smul.addr %s288, 20
        %s290 = smul.addr %s289, 4
        %s291 = scalar_lea.vmem %s0, %s290
        %p292 = pneg %p47
        %p293 = pneg %p44
        %p294 = scmp.lt.s32.totalorder %s26, 1
        %s295 = scalar_select %p294, %s26, 1
        %s296 = smul.addr %s295, 8
        %s297 = smul.addr %s296, 8
        %s298 = scalar_lea.vmem %s1, %s297
        %p299 = pneg %p73
        %p300 = pneg %p70
        %p301 = pneg %p94
        %p302 = pneg %p91
        %p303 = pneg %p115
        %p304 = pneg %p112
        %p305 = pneg %p136
        %p306 = pneg %p133
        %p307 = pneg %p157
        %p308 = pneg %p154
        %p309 = pneg %p178
        %p310 = pneg %p175
        %p311 = pneg %p204
        %p312 = pneg %p201
        %s313 = sand.u32 %s191, 1
        %s314 = scalar_lea.sflag [#allocation3], %s313
        %s315 = sand.u32 %s191, 1
        %s316 = smul.addr %s315, 64
        %s317 = scalar_lea.vmem [#allocation2], %s316
        %p318 = pneg %p230
        %p319 = pneg %p227
        %s320 = sand.u32 %s217, 1
        %s321 = scalar_lea.sflag [#allocation5], %s320
        %s322 = sand.u32 %s217, 1
        %s323 = smul.addr %s322, 64
        %s324 = scalar_lea.vmem [#allocation4], %s323
        %p325 = scmp.lt.s32.totalorder %s26, 1
        %s326 = scalar_select %p325, %s26, 1
        %s327 = smul.addr %s326, 20
        %s328 = smul.addr %s327, 4
        %s329 = scalar_lea.vmem %s0, %s328
        %p330 = scmp.lt.s32.totalorder %s26, 1
        %s331 = scalar_select %p330, %s26, 1
        %s332 = smul.addr %s331, 8
        %s333 = smul.addr %s332, 8
        %s334 = scalar_lea.vmem %s1, %s333
        %v336 = vld [vmem:[%s329] sm:$0xf]
        %v337 = vld [vmem:[%s329 + $0x8] sm:$0xf]
        %v338 = vld [vmem:[%s329 + $0x10] sm:$0xf]
        %v339 = vld [vmem:[%s329 + $0x18] sm:$0xf]
        %v340 = vld [vmem:[%s329 + $0x20] sm:$0xf]
        %v341 = vld [vmem:[%s329 + $0x28] sm:$0xf]
        %v342 = vld [vmem:[%s329 + $0x30] sm:$0xf]
        %v343 = vld [vmem:[%s329 + $0x38] sm:$0xf]
        %v344 = vld [vmem:[%s2] sm:$0xf]
        %v345 = vld [vmem:[%s2 + $0x4] sm:$0xf]
        %v346 = vld [vmem:[%s2 + $0x8] sm:$0xf]
        %v347 = vld [vmem:[%s2 + $0xc] sm:$0xf]
        %v348 = vld [vmem:[%s2 + $0x10] sm:$0x3]
        %v349 = vld [vmem:[%s329 + $0x4] sm:$0x1]
        %v350 = vld [vmem:[%s329 + $0xc] sm:$0x1]
        %v351 = vld [vmem:[%s329 + $0x14] sm:$0x1]
        %v352 = vld [vmem:[%s329 + $0x1c] sm:$0x1]
        %v353 = vld [vmem:[%s329 + $0x24] sm:$0x1]
        %v354 = vld [vmem:[%s329 + $0x2c] sm:$0x1]
        %v355 = vld [vmem:[%s329 + $0x34] sm:$0x1]
        %v356 = vld [vmem:[%s329 + $0x3c] sm:$0x1]
        %vm357 = vsmask.f32 3328
        %vm358 = vsmask.f32 7440
        %vm359 = vmor %vm357, %vm358
        %v361 = vshrl.u32 %v336, 16
        %v363 = vrot.slane %v361, 4
        %v364 = vshll.u32 %v336, 16
        %v366 = vrot.slane %v364, 5
        %v367 = vor.u32 %v363, %v366
        %v368 = vrot.slane %v367, 4
        %v370 = vshll.u32 %v349, 16
        %v372 = vrot.slane %v370, 5
        %v373 = vsel %vm359, %v368, %v372
        %v375 = vshrl.u32 %v337, 16
        %v377 = vrot.slane %v375, 4
        %v378 = vshll.u32 %v337, 16
        %v380 = vrot.slane %v378, 5
        %v381 = vor.u32 %v377, %v380
        %v382 = vrot.slane %v381, 4
        %v384 = vshll.u32 %v350, 16
        %v386 = vrot.slane %v384, 5
        %v387 = vsel %vm359, %v382, %v386
        %v389 = vshrl.u32 %v338, 16
        %v391 = vrot.slane %v389, 4
        %v392 = vshll.u32 %v338, 16
        %v394 = vrot.slane %v392, 5
        %v395 = vor.u32 %v391, %v394
        %v396 = vrot.slane %v395, 4
        %v398 = vshll.u32 %v351, 16
        %v400 = vrot.slane %v398, 5
        %v401 = vsel %vm359, %v396, %v400
        %v403 = vshrl.u32 %v339, 16
        %v405 = vrot.slane %v403, 4
        %v406 = vshll.u32 %v339, 16
        %v408 = vrot.slane %v406, 5
        %v409 = vor.u32 %v405, %v408
        %v410 = vrot.slane %v409, 4
        %v412 = vshll.u32 %v352, 16
        %v414 = vrot.slane %v412, 5
        %v415 = vsel %vm359, %v410, %v414
        %v417 = vshrl.u32 %v340, 16
        %v419 = vrot.slane %v417, 4
        %v420 = vshll.u32 %v340, 16
        %v422 = vrot.slane %v420, 5
        %v423 = vor.u32 %v419, %v422
        %v424 = vrot.slane %v423, 4
        %v426 = vshll.u32 %v353, 16
        %v428 = vrot.slane %v426, 5
        %v429 = vsel %vm359, %v424, %v428
        %v431 = vshrl.u32 %v341, 16
        %v433 = vrot.slane %v431, 4
        %v434 = vshll.u32 %v341, 16
        %v436 = vrot.slane %v434, 5
        %v437 = vor.u32 %v433, %v436
        %v438 = vrot.slane %v437, 4
        %v440 = vshll.u32 %v354, 16
        %v442 = vrot.slane %v440, 5
        %v443 = vsel %vm359, %v438, %v442
        %v445 = vshrl.u32 %v342, 16
        %v447 = vrot.slane %v445, 4
        %v448 = vshll.u32 %v342, 16
        %v450 = vrot.slane %v448, 5
        %v451 = vor.u32 %v447, %v450
        %v452 = vrot.slane %v451, 4
        %v454 = vshll.u32 %v355, 16
        %v456 = vrot.slane %v454, 5
        %v457 = vsel %vm359, %v452, %v456
        %v459 = vshrl.u32 %v343, 16
        %v461 = vrot.slane %v459, 4
        %v462 = vshll.u32 %v343, 16
        %v464 = vrot.slane %v462, 5
        %v465 = vor.u32 %v461, %v464
        %v466 = vrot.slane %v465, 4
        %v468 = vshll.u32 %v356, 16
        %v470 = vrot.slane %v468, 5
        %v471 = vsel %vm359, %v466, %v470
        %s472 = scalar_lea.vmem %s2, 20
        %v473 = vld [vmem:[%s472] sm:$0xf]
        %v474 = vld [vmem:[%s472 + $0x4] sm:$0xf]
        %v475 = vld [vmem:[%s472 + $0x8] sm:$0xf]
        %v476 = vld [vmem:[%s472 + $0xc] sm:$0xf]
        %v477 = vld [vmem:[%s472 + $0x10] sm:$0x3]
        %v478 = vunpack.c.l.b16 %v373
        %v479 = vunpack.c.l.b16 %v387
        %v480 = vunpack.c.l.b16 %v401
        %v481 = vunpack.c.l.b16 %v415
        %v482 = vunpack.c.l.b16 %v429
        %v483 = vunpack.c.l.b16 %v443
        %v484 = vunpack.c.l.b16 %v457
        %v485 = vunpack.c.l.b16 %v471
        %v486 = vpack.c.b16 %v479, %v478
        %v487 = vpack.c.b16 %v481, %v480
        %v488 = vpack.c.b16 %v483, %v482
        %v489 = vpack.c.b16 %v485, %v484
        %v495 = vunpack.c.l.b16 %v473
        %v496 = vunpack.c.l.b16 %v474
        %v497 = vunpack.c.l.b16 %v475
        %v498 = vunpack.c.l.b16 %v476
        %v499 = vunpack.c.l.b16 %v477
        %v500 = vpack.c.b16 %v496, %v495
        %v501 = vpack.c.b16 %v498, %v497
        %v502 = vpack.c.b16 %v499, %v499
        %vm505 = vcmask 293888
        %v507 = vsel %vm505, %v486, 0
        %v510 = vsel %vm505, %v487, 0
        %v513 = vsel %vm505, %v488, 0
        %v516 = vsel %vm505, %v489, 0
        %vm518 = vcmask 1041408
        %v520 = vsel %vm518, %v502, 0
        %522 = vmatprep.subr.bf16.mxu0 0
        %523 = vmatpush1.bf16.msra.mxu0 0
        %524 = vmatprep.subr.bf16.mxu0 0
        %525 = vmatpush1.bf16.msra.mxu0 0
        %526 = vmatprep.subr.bf16.mxu0 0
        %527 = vmatpush1.bf16.msra.mxu0 0
        %528 = vmatprep.subr.bf16.mxu0 0
        %529 = vmatpush1.bf16.msra.mxu0 0
        %530 = vmatprep.subr.bf16.mxu0 0
        %531 = vmatpush1.bf16.msra.mxu0 0
        %532 = vmatprep.subr.bf16.mxu0 0
        %533 = vmatpush1.bf16.msra.mxu0 %v520
        %534 = vmatprep.subr.bf16.mxu0 0
        %535 = vmatpush1.bf16.msra.mxu0 %v501
        %536 = vmatprep.subr.bf16.mxu0 0
        %537 = vmatpush1.bf16.msra.mxu0 %v500
        %538 = vmatprep.subr.bf16.mxu0 0
        %539 = vmatpush2.bf16.msra.mxu0 0
        %540 = vmatprep.subr.bf16.mxu0 0
        %541 = vmatpush2.bf16.msra.mxu0 0
        %542 = vmatprep.subr.bf16.mxu0 0
        %543 = vmatpush2.bf16.msra.mxu0 0
        %544 = vmatprep.subr.bf16.mxu0 0
        %545 = vmatpush2.bf16.msra.mxu0 0
        %546 = vmatprep.subr.bf16.mxu0 0
        %547 = vmatpush2.bf16.msra.mxu0 0
        %548 = vmatprep.subr.bf16.mxu0 0
        %549 = vmatpush2.bf16.msra.mxu0 0
        %550 = vmatprep.subr.bf16.mxu0 0
        %551 = vmatpush2.bf16.msra.mxu0 0
        %552 = vmatprep.subr.bf16.mxu0 0
        %553 = vmatpush2.bf16.msra.mxu0 0
        %554 = vmatprep.mubr.bf16.mxu0 0
        %555 = vmatmul.mubr.bf16.gmra.mxu0 %v507
        %v556 = vpop.f32.mrf.mxu0
        %v557 = vadd.f32 0.0, %v556
        %v558 = vpop.f32.mrf.mxu0
        %v559 = vpop.f32.mrf.mxu0
        %v560 = vadd.f32 0.0, %v559
        %v561 = vpop.f32.mrf.mxu0
        %562 = vmatprep.mubr.bf16.mxu0 0
        %563 = vmatmul.mubr.bf16.gmra.mxu0 %v510
        %v564 = vpop.f32.mrf.mxu0
        %v565 = vadd.f32 0.0, %v564
        %v566 = vpop.f32.mrf.mxu0
        %v567 = vpop.f32.mrf.mxu0
        %v568 = vadd.f32 0.0, %v567
        %v569 = vpop.f32.mrf.mxu0
        %570 = vmatprep.mubr.bf16.mxu0 0
        %571 = vmatmul.mubr.bf16.gmra.mxu0 %v513
        %v572 = vpop.f32.mrf.mxu0
        %v573 = vadd.f32 0.0, %v572
        %v574 = vpop.f32.mrf.mxu0
        %v575 = vpop.f32.mrf.mxu0
        %v576 = vadd.f32 0.0, %v575
        %v577 = vpop.f32.mrf.mxu0
        %578 = vmatprep.mubr.bf16.mxu0 0
        %579 = vmatmul.mubr.bf16.gmra.mxu0 %v516
        %v580 = vpop.f32.mrf.mxu0
        %v581 = vadd.f32 0.0, %v580
        %v582 = vpop.f32.mrf.mxu0
        %v583 = vpop.f32.mrf.mxu0
        %v584 = vadd.f32 0.0, %v583
        %v585 = vpop.f32.mrf.mxu0
        %586 = vdwg.mxu0
        %v595 = vunpack.c.l.b16 %v336
        %v596 = vunpack.c.l.b16 %v337
        %v597 = vunpack.c.l.b16 %v338
        %v598 = vunpack.c.l.b16 %v339
        %v599 = vunpack.c.l.b16 %v340
        %v600 = vunpack.c.l.b16 %v341
        %v601 = vunpack.c.l.b16 %v342
        %v602 = vunpack.c.l.b16 %v343
        %v603 = vpack.c.b16 %v596, %v595
        %v604 = vpack.c.b16 %v598, %v597
        %v605 = vpack.c.b16 %v600, %v599
        %v606 = vpack.c.b16 %v602, %v601
        %v612 = vunpack.c.l.b16 %v344
        %v613 = vunpack.c.l.b16 %v345
        %v614 = vunpack.c.l.b16 %v346
        %v615 = vunpack.c.l.b16 %v347
        %v616 = vunpack.c.l.b16 %v348
        %v617 = vpack.c.b16 %v613, %v612
        %v618 = vpack.c.b16 %v615, %v614
        %v619 = vpack.c.b16 %v616, %v616
        %v623 = vsel %vm505, %v603, 0
        %v626 = vsel %vm505, %v604, 0
        %v629 = vsel %vm505, %v605, 0
        %v632 = vsel %vm505, %v606, 0
        %v635 = vsel %vm518, %v619, 0
        %637 = vmatprep.subr.bf16.mxu0 0
        %638 = vmatpush1.bf16.msra.mxu0 0
        %639 = vmatprep.subr.bf16.mxu0 0
        %640 = vmatpush1.bf16.msra.mxu0 0
        %641 = vmatprep.subr.bf16.mxu0 0
        %642 = vmatpush1.bf16.msra.mxu0 0
        %643 = vmatprep.subr.bf16.mxu0 0
        %644 = vmatpush1.bf16.msra.mxu0 0
        %645 = vmatprep.subr.bf16.mxu0 0
        %646 = vmatpush1.bf16.msra.mxu0 0
        %647 = vmatprep.subr.bf16.mxu0 0
        %648 = vmatpush1.bf16.msra.mxu0 %v635
        %649 = vmatprep.subr.bf16.mxu0 0
        %650 = vmatpush1.bf16.msra.mxu0 %v618
        %651 = vmatprep.subr.bf16.mxu0 0
        %652 = vmatpush1.bf16.msra.mxu0 %v617
        %653 = vmatprep.subr.bf16.mxu0 0
        %654 = vmatpush2.bf16.msra.mxu0 0
        %655 = vmatprep.subr.bf16.mxu0 0
        %656 = vmatpush2.bf16.msra.mxu0 0
        %657 = vmatprep.subr.bf16.mxu0 0
        %658 = vmatpush2.bf16.msra.mxu0 0
        %659 = vmatprep.subr.bf16.mxu0 0
        %660 = vmatpush2.bf16.msra.mxu0 0
        %661 = vmatprep.subr.bf16.mxu0 0
        %662 = vmatpush2.bf16.msra.mxu0 0
        %663 = vmatprep.subr.bf16.mxu0 0
        %664 = vmatpush2.bf16.msra.mxu0 0
        %665 = vmatprep.subr.bf16.mxu0 0
        %666 = vmatpush2.bf16.msra.mxu0 0
        %667 = vmatprep.subr.bf16.mxu0 0
        %668 = vmatpush2.bf16.msra.mxu0 0
        %669 = vmatprep.mubr.bf16.mxu0 0
        %670 = vmatmul.mubr.bf16.gmra.mxu0 %v623
        %v671 = vpop.f32.mrf.mxu0
        %v672 = vadd.f32 %v557, %v671
        %v673 = vpop.f32.mrf.mxu0
        %v674 = vpop.f32.mrf.mxu0
        %v675 = vadd.f32 %v560, %v674
        %v676 = vpop.f32.mrf.mxu0
        %677 = vmatprep.mubr.bf16.mxu0 0
        %678 = vmatmul.mubr.bf16.gmra.mxu0 %v626
        %v679 = vpop.f32.mrf.mxu0
        %v680 = vadd.f32 %v565, %v679
        %v681 = vpop.f32.mrf.mxu0
        %v682 = vpop.f32.mrf.mxu0
        %v683 = vadd.f32 %v568, %v682
        %v684 = vpop.f32.mrf.mxu0
        %685 = vmatprep.mubr.bf16.mxu0 0
        %686 = vmatmul.mubr.bf16.gmra.mxu0 %v629
        %v687 = vpop.f32.mrf.mxu0
        %v688 = vadd.f32 %v573, %v687
        %v689 = vpop.f32.mrf.mxu0
        %v690 = vpop.f32.mrf.mxu0
        %v691 = vadd.f32 %v576, %v690
        %v692 = vpop.f32.mrf.mxu0
        %693 = vmatprep.mubr.bf16.mxu0 0
        %694 = vmatmul.mubr.bf16.gmra.mxu0 %v632
        %v695 = vpop.f32.mrf.mxu0
        %v696 = vadd.f32 %v581, %v695
        %v697 = vpop.f32.mrf.mxu0
        %v698 = vpop.f32.mrf.mxu0
        %v699 = vadd.f32 %v584, %v698
        %v700 = vpop.f32.mrf.mxu0
        %701 = vdwg.mxu0
        %v702 = vld [vmem:[%s329] sm:$0xe]
        %v703 = vld [vmem:[%s329 + $0x8] sm:$0xe]
        %v704 = vld [vmem:[%s329 + $0x10] sm:$0xe]
        %v705 = vld [vmem:[%s329 + $0x18] sm:$0xe]
        %v706 = vld [vmem:[%s329 + $0x20] sm:$0xe]
        %v707 = vld [vmem:[%s329 + $0x28] sm:$0xe]
        %v708 = vld [vmem:[%s329 + $0x30] sm:$0xe]
        %v709 = vld [vmem:[%s329 + $0x38] sm:$0xe]
        %vm726 = vcmask 1042432
        %vm727 = vcmask 1046532
        %vm728 = vmor %vm726, %vm727
        %v729 = vrot.slane %v702, 5
        %v730 = vrot.slane %v729, 4
        %v731 = vrot.slane %v349, 5
        %v732 = vsel %vm728, %v730, %v731
        %v733 = vrot.slane %v703, 5
        %v734 = vrot.slane %v733, 4
        %v735 = vrot.slane %v350, 5
        %v736 = vsel %vm728, %v734, %v735
        %v737 = vrot.slane %v704, 5
        %v738 = vrot.slane %v737, 4
        %v739 = vrot.slane %v351, 5
        %v740 = vsel %vm728, %v738, %v739
        %v741 = vrot.slane %v705, 5
        %v742 = vrot.slane %v741, 4
        %v743 = vrot.slane %v352, 5
        %v744 = vsel %vm728, %v742, %v743
        %v745 = vrot.slane %v706, 5
        %v746 = vrot.slane %v745, 4
        %v747 = vrot.slane %v353, 5
        %v748 = vsel %vm728, %v746, %v747
        %v749 = vrot.slane %v707, 5
        %v750 = vrot.slane %v749, 4
        %v751 = vrot.slane %v354, 5
        %v752 = vsel %vm728, %v750, %v751
        %v753 = vrot.slane %v708, 5
        %v754 = vrot.slane %v753, 4
        %v755 = vrot.slane %v355, 5
        %v756 = vsel %vm728, %v754, %v755
        %v757 = vrot.slane %v709, 5
        %v758 = vrot.slane %v757, 4
        %v759 = vrot.slane %v356, 5
        %v760 = vsel %vm728, %v758, %v759
        %s761 = scalar_lea.vmem %s2, 40
        %v762 = vld [vmem:[%s761] sm:$0xf]
        %v763 = vld [vmem:[%s761 + $0x4] sm:$0xf]
        %v764 = vld [vmem:[%s761 + $0x8] sm:$0xf]
        %v765 = vld [vmem:[%s761 + $0xc] sm:$0xf]
        %v766 = vld [vmem:[%s761 + $0x10] sm:$0x3]
        %v767 = vunpack.c.l.b16 %v732
        %v768 = vunpack.c.l.b16 %v736
        %v769 = vunpack.c.l.b16 %v740
        %v770 = vunpack.c.l.b16 %v744
        %v771 = vunpack.c.l.b16 %v748
        %v772 = vunpack.c.l.b16 %v752
        %v773 = vunpack.c.l.b16 %v756
        %v774 = vunpack.c.l.b16 %v760
        %v775 = vpack.c.b16 %v768, %v767
        %v776 = vpack.c.b16 %v770, %v769
        %v777 = vpack.c.b16 %v772, %v771
        %v778 = vpack.c.b16 %v774, %v773
        %v784 = vunpack.c.l.b16 %v762
        %v785 = vunpack.c.l.b16 %v763
        %v786 = vunpack.c.l.b16 %v764
        %v787 = vunpack.c.l.b16 %v765
        %v788 = vunpack.c.l.b16 %v766
        %v789 = vpack.c.b16 %v785, %v784
        %v790 = vpack.c.b16 %v787, %v786
        %v791 = vpack.c.b16 %v788, %v788
        %v795 = vsel %vm505, %v775, 0
        %v798 = vsel %vm505, %v776, 0
        %v801 = vsel %vm505, %v777, 0
        %v804 = vsel %vm505, %v778, 0
        %v807 = vsel %vm518, %v791, 0
        %809 = vmatprep.subr.bf16.mxu0 0
        %810 = vmatpush1.bf16.msra.mxu0 0
        %811 = vmatprep.subr.bf16.mxu0 0
        %812 = vmatpush1.bf16.msra.mxu0 0
        %813 = vmatprep.subr.bf16.mxu0 0
        %814 = vmatpush1.bf16.msra.mxu0 0
        %815 = vmatprep.subr.bf16.mxu0 0
        %816 = vmatpush1.bf16.msra.mxu0 0
        %817 = vmatprep.subr.bf16.mxu0 0
        %818 = vmatpush1.bf16.msra.mxu0 0
        %819 = vmatprep.subr.bf16.mxu0 0
        %820 = vmatpush1.bf16.msra.mxu0 %v807
        %821 = vmatprep.subr.bf16.mxu0 0
        %822 = vmatpush1.bf16.msra.mxu0 %v790
        %823 = vmatprep.subr.bf16.mxu0 0
        %824 = vmatpush1.bf16.msra.mxu0 %v789
        %825 = vmatprep.subr.bf16.mxu0 0
        %826 = vmatpush2.bf16.msra.mxu0 0
        %827 = vmatprep.subr.bf16.mxu0 0
        %828 = vmatpush2.bf16.msra.mxu0 0
        %829 = vmatprep.subr.bf16.mxu0 0
        %830 = vmatpush2.bf16.msra.mxu0 0
        %831 = vmatprep.subr.bf16.mxu0 0
        %832 = vmatpush2.bf16.msra.mxu0 0
        %833 = vmatprep.subr.bf16.mxu0 0
        %834 = vmatpush2.bf16.msra.mxu0 0
        %835 = vmatprep.subr.bf16.mxu0 0
        %836 = vmatpush2.bf16.msra.mxu0 0
        %837 = vmatprep.subr.bf16.mxu0 0
        %838 = vmatpush2.bf16.msra.mxu0 0
        %839 = vmatprep.subr.bf16.mxu0 0
        %840 = vmatpush2.bf16.msra.mxu0 0
        %841 = vmatprep.mubr.bf16.mxu0 0
        %842 = vmatmul.mubr.bf16.gmra.mxu0 %v795
        %v843 = vpop.f32.mrf.mxu0
        %v844 = vadd.f32 0.0, %v843
        %v845 = vpop.f32.mrf.mxu0
        %v846 = vpop.f32.mrf.mxu0
        %v847 = vadd.f32 0.0, %v846
        %v848 = vpop.f32.mrf.mxu0
        %849 = vmatprep.mubr.bf16.mxu0 0
        %850 = vmatmul.mubr.bf16.gmra.mxu0 %v798
        %v851 = vpop.f32.mrf.mxu0
        %v852 = vadd.f32 0.0, %v851
        %v853 = vpop.f32.mrf.mxu0
        %v854 = vpop.f32.mrf.mxu0
        %v855 = vadd.f32 0.0, %v854
        %v856 = vpop.f32.mrf.mxu0
        %857 = vmatprep.mubr.bf16.mxu0 0
        %858 = vmatmul.mubr.bf16.gmra.mxu0 %v801
        %v859 = vpop.f32.mrf.mxu0
        %v860 = vadd.f32 0.0, %v859
        %v861 = vpop.f32.mrf.mxu0
        %v862 = vpop.f32.mrf.mxu0
        %v863 = vadd.f32 0.0, %v862
        %v864 = vpop.f32.mrf.mxu0
        %865 = vmatprep.mubr.bf16.mxu0 0
        %866 = vmatmul.mubr.bf16.gmra.mxu0 %v804
        %v867 = vpop.f32.mrf.mxu0
        %v868 = vadd.f32 0.0, %v867
        %v869 = vpop.f32.mrf.mxu0
        %v870 = vpop.f32.mrf.mxu0
        %v871 = vadd.f32 0.0, %v870
        %v872 = vpop.f32.mrf.mxu0
        %873 = vdwg.mxu0
        %v874 = vadd.f32 %v672, %v844
        %v875 = vadd.f32 %v675, %v847
        %v876 = vadd.f32 %v680, %v852
        %v877 = vadd.f32 %v683, %v855
        %v878 = vadd.f32 %v688, %v860
        %v879 = vadd.f32 %v691, %v863
        %v880 = vadd.f32 %v696, %v868
        %v881 = vadd.f32 %v699, %v871
        %s882 = scalar_lea.vmem %s329, 8
        %v883 = vld [vmem:[%s882] sm:$0xf]
        %v884 = vld [vmem:[%s882 + $0x8] sm:$0xf]
        %v885 = vld [vmem:[%s882 + $0x10] sm:$0xf]
        %v886 = vld [vmem:[%s882 + $0x18] sm:$0xf]
        %v887 = vld [vmem:[%s882 + $0x20] sm:$0xf]
        %v888 = vld [vmem:[%s882 + $0x28] sm:$0xf]
        %v889 = vld [vmem:[%s882 + $0x30] sm:$0xf]
        %v890 = vld [vmem:[%s882 + $0x38] sm:$0xf]
        %s891 = scalar_lea.vmem %s2, 60
        %v892 = vld [vmem:[%s891] sm:$0xf]
        %v893 = vld [vmem:[%s891 + $0x4] sm:$0xf]
        %v894 = vld [vmem:[%s891 + $0x8] sm:$0xf]
        %v895 = vld [vmem:[%s891 + $0xc] sm:$0xf]
        %v896 = vld [vmem:[%s891 + $0x10] sm:$0x3]
        %v905 = vunpack.c.l.b16 %v883
        %v906 = vunpack.c.l.b16 %v884
        %v907 = vunpack.c.l.b16 %v885
        %v908 = vunpack.c.l.b16 %v886
        %v909 = vunpack.c.l.b16 %v887
        %v910 = vunpack.c.l.b16 %v888
        %v911 = vunpack.c.l.b16 %v889
        %v912 = vunpack.c.l.b16 %v890
        %v913 = vpack.c.b16 %v906, %v905
        %v914 = vpack.c.b16 %v908, %v907
        %v915 = vpack.c.b16 %v910, %v909
        %v916 = vpack.c.b16 %v912, %v911
        %v922 = vunpack.c.l.b16 %v892
        %v923 = vunpack.c.l.b16 %v893
        %v924 = vunpack.c.l.b16 %v894
        %v925 = vunpack.c.l.b16 %v895
        %v926 = vunpack.c.l.b16 %v896
        %v927 = vpack.c.b16 %v923, %v922
        %v928 = vpack.c.b16 %v925, %v924
        %v929 = vpack.c.b16 %v926, %v926
        %v933 = vsel %vm505, %v913, 0
        %v936 = vsel %vm505, %v914, 0
        %v939 = vsel %vm505, %v915, 0
        %v942 = vsel %vm505, %v916, 0
        %v945 = vsel %vm518, %v929, 0
        %947 = vmatprep.subr.bf16.mxu0 0
        %948 = vmatpush1.bf16.msra.mxu0 0
        %949 = vmatprep.subr.bf16.mxu0 0
        %950 = vmatpush1.bf16.msra.mxu0 0
        %951 = vmatprep.subr.bf16.mxu0 0
        %952 = vmatpush1.bf16.msra.mxu0 0
        %953 = vmatprep.subr.bf16.mxu0 0
        %954 = vmatpush1.bf16.msra.mxu0 0
        %955 = vmatprep.subr.bf16.mxu0 0
        %956 = vmatpush1.bf16.msra.mxu0 0
        %957 = vmatprep.subr.bf16.mxu0 0
        %958 = vmatpush1.bf16.msra.mxu0 %v945
        %959 = vmatprep.subr.bf16.mxu0 0
        %960 = vmatpush1.bf16.msra.mxu0 %v928
        %961 = vmatprep.subr.bf16.mxu0 0
        %962 = vmatpush1.bf16.msra.mxu0 %v927
        %963 = vmatprep.subr.bf16.mxu0 0
        %964 = vmatpush2.bf16.msra.mxu0 0
        %965 = vmatprep.subr.bf16.mxu0 0
        %966 = vmatpush2.bf16.msra.mxu0 0
        %967 = vmatprep.subr.bf16.mxu0 0
        %968 = vmatpush2.bf16.msra.mxu0 0
        %969 = vmatprep.subr.bf16.mxu0 0
        %970 = vmatpush2.bf16.msra.mxu0 0
        %971 = vmatprep.subr.bf16.mxu0 0
        %972 = vmatpush2.bf16.msra.mxu0 0
        %973 = vmatprep.subr.bf16.mxu0 0
        %974 = vmatpush2.bf16.msra.mxu0 0
        %975 = vmatprep.subr.bf16.mxu0 0
        %976 = vmatpush2.bf16.msra.mxu0 0
        %977 = vmatprep.subr.bf16.mxu0 0
        %978 = vmatpush2.bf16.msra.mxu0 0
        %979 = vmatprep.mubr.bf16.mxu0 0
        %980 = vmatmul.mubr.bf16.gmra.mxu0 %v933
        %v981 = vpop.f32.mrf.mxu0
        %v982 = vadd.f32 0.0, %v981
        %v983 = vpop.f32.mrf.mxu0
        %v984 = vpop.f32.mrf.mxu0
        %v985 = vadd.f32 0.0, %v984
        %v986 = vpop.f32.mrf.mxu0
        %987 = vmatprep.mubr.bf16.mxu0 0
        %988 = vmatmul.mubr.bf16.gmra.mxu0 %v936
        %v989 = vpop.f32.mrf.mxu0
        %v990 = vadd.f32 0.0, %v989
        %v991 = vpop.f32.mrf.mxu0
        %v992 = vpop.f32.mrf.mxu0
        %v993 = vadd.f32 0.0, %v992
        %v994 = vpop.f32.mrf.mxu0
        %995 = vmatprep.mubr.bf16.mxu0 0
        %996 = vmatmul.mubr.bf16.gmra.mxu0 %v939
        %v997 = vpop.f32.mrf.mxu0
        %v998 = vadd.f32 0.0, %v997
        %v999 = vpop.f32.mrf.mxu0
        %v1000 = vpop.f32.mrf.mxu0
        %v1001 = vadd.f32 0.0, %v1000
        %v1002 = vpop.f32.mrf.mxu0
        %1003 = vmatprep.mubr.bf16.mxu0 0
        %1004 = vmatmul.mubr.bf16.gmra.mxu0 %v942
        %v1005 = vpop.f32.mrf.mxu0
        %v1006 = vadd.f32 0.0, %v1005
        %v1007 = vpop.f32.mrf.mxu0
        %v1008 = vpop.f32.mrf.mxu0
        %v1009 = vadd.f32 0.0, %v1008
        %v1010 = vpop.f32.mrf.mxu0
        %1011 = vdwg.mxu0
        %v1012 = vadd.f32 %v874, %v982
        %v1013 = vadd.f32 %v875, %v985
        %v1014 = vadd.f32 %v876, %v990
        %v1015 = vadd.f32 %v877, %v993
        %v1016 = vadd.f32 %v878, %v998
        %v1017 = vadd.f32 %v879, %v1001
        %v1018 = vadd.f32 %v880, %v1006
        %v1019 = vadd.f32 %v881, %v1009
        %v1020 = vld [vmem:[%s882] sm:$0xf]
        %v1021 = vld [vmem:[%s882 + $0x4] sm:$0x1]
        %v1022 = vld [vmem:[%s882 + $0x8] sm:$0xf]
        %v1023 = vld [vmem:[%s882 + $0xc] sm:$0x1]
        %v1024 = vld [vmem:[%s882 + $0x10] sm:$0xf]
        %v1025 = vld [vmem:[%s882 + $0x14] sm:$0x1]
        %v1026 = vld [vmem:[%s882 + $0x18] sm:$0xf]
        %v1027 = vld [vmem:[%s882 + $0x1c] sm:$0x1]
        %v1028 = vld [vmem:[%s882 + $0x20] sm:$0xf]
        %v1029 = vld [vmem:[%s882 + $0x24] sm:$0x1]
        %v1030 = vld [vmem:[%s882 + $0x28] sm:$0xf]
        %v1031 = vld [vmem:[%s882 + $0x2c] sm:$0x1]
        %v1032 = vld [vmem:[%s882 + $0x30] sm:$0xf]
        %v1033 = vld [vmem:[%s882 + $0x34] sm:$0x1]
        %v1034 = vld [vmem:[%s882 + $0x38] sm:$0xf]
        %v1035 = vld [vmem:[%s882 + $0x3c] sm:$0x1]
        %v1037 = vshrl.u32 %v1020, 16
        %v1039 = vrot.slane %v1037, 4
        %v1040 = vshll.u32 %v1020, 16
        %v1042 = vrot.slane %v1040, 5
        %v1043 = vor.u32 %v1039, %v1042
        %v1044 = vrot.slane %v1043, 4
        %v1046 = vshll.u32 %v1021, 16
        %v1048 = vrot.slane %v1046, 5
        %v1049 = vsel %vm359, %v1044, %v1048
        %v1051 = vshrl.u32 %v1022, 16
        %v1053 = vrot.slane %v1051, 4
        %v1054 = vshll.u32 %v1022, 16
        %v1056 = vrot.slane %v1054, 5
        %v1057 = vor.u32 %v1053, %v1056
        %v1058 = vrot.slane %v1057, 4
        %v1060 = vshll.u32 %v1023, 16
        %v1062 = vrot.slane %v1060, 5
        %v1063 = vsel %vm359, %v1058, %v1062
        %v1065 = vshrl.u32 %v1024, 16
        %v1067 = vrot.slane %v1065, 4
        %v1068 = vshll.u32 %v1024, 16
        %v1070 = vrot.slane %v1068, 5
        %v1071 = vor.u32 %v1067, %v1070
        %v1072 = vrot.slane %v1071, 4
        %v1074 = vshll.u32 %v1025, 16
        %v1076 = vrot.slane %v1074, 5
        %v1077 = vsel %vm359, %v1072, %v1076
        %v1079 = vshrl.u32 %v1026, 16
        %v1081 = vrot.slane %v1079, 4
        %v1082 = vshll.u32 %v1026, 16
        %v1084 = vrot.slane %v1082, 5
        %v1085 = vor.u32 %v1081, %v1084
        %v1086 = vrot.slane %v1085, 4
        %v1088 = vshll.u32 %v1027, 16
        %v1090 = vrot.slane %v1088, 5
        %v1091 = vsel %vm359, %v1086, %v1090
        %v1093 = vshrl.u32 %v1028, 16
        %v1095 = vrot.slane %v1093, 4
        %v1096 = vshll.u32 %v1028, 16
        %v1098 = vrot.slane %v1096, 5
        %v1099 = vor.u32 %v1095, %v1098
        %v1100 = vrot.slane %v1099, 4
        %v1102 = vshll.u32 %v1029, 16
        %v1104 = vrot.slane %v1102, 5
        %v1105 = vsel %vm359, %v1100, %v1104
        %v1107 = vshrl.u32 %v1030, 16
        %v1109 = vrot.slane %v1107, 4
        %v1110 = vshll.u32 %v1030, 16
        %v1112 = vrot.slane %v1110, 5
        %v1113 = vor.u32 %v1109, %v1112
        %v1114 = vrot.slane %v1113, 4
        %v1116 = vshll.u32 %v1031, 16
        %v1118 = vrot.slane %v1116, 5
        %v1119 = vsel %vm359, %v1114, %v1118
        %v1121 = vshrl.u32 %v1032, 16
        %v1123 = vrot.slane %v1121, 4
        %v1124 = vshll.u32 %v1032, 16
        %v1126 = vrot.slane %v1124, 5
        %v1127 = vor.u32 %v1123, %v1126
        %v1128 = vrot.slane %v1127, 4
        %v1130 = vshll.u32 %v1033, 16
        %v1132 = vrot.slane %v1130, 5
        %v1133 = vsel %vm359, %v1128, %v1132
        %v1135 = vshrl.u32 %v1034, 16
        %v1137 = vrot.slane %v1135, 4
        %v1138 = vshll.u32 %v1034, 16
        %v1140 = vrot.slane %v1138, 5
        %v1141 = vor.u32 %v1137, %v1140
        %v1142 = vrot.slane %v1141, 4
        %v1144 = vshll.u32 %v1035, 16
        %v1146 = vrot.slane %v1144, 5
        %v1147 = vsel %vm359, %v1142, %v1146
        %s1148 = scalar_lea.vmem %s2, 80
        %v1149 = vld [vmem:[%s1148] sm:$0xf]
        %v1150 = vld [vmem:[%s1148 + $0x4] sm:$0xf]
        %v1151 = vld [vmem:[%s1148 + $0x8] sm:$0xf]
        %v1152 = vld [vmem:[%s1148 + $0xc] sm:$0xf]
        %v1153 = vld [vmem:[%s1148 + $0x10] sm:$0x3]
        %v1154 = vunpack.c.l.b16 %v1049
        %v1155 = vunpack.c.l.b16 %v1063
        %v1156 = vunpack.c.l.b16 %v1077
        %v1157 = vunpack.c.l.b16 %v1091
        %v1158 = vunpack.c.l.b16 %v1105
        %v1159 = vunpack.c.l.b16 %v1119
        %v1160 = vunpack.c.l.b16 %v1133
        %v1161 = vunpack.c.l.b16 %v1147
        %v1162 = vpack.c.b16 %v1155, %v1154
        %v1163 = vpack.c.b16 %v1157, %v1156
        %v1164 = vpack.c.b16 %v1159, %v1158
        %v1165 = vpack.c.b16 %v1161, %v1160
        %v1171 = vunpack.c.l.b16 %v1149
        %v1172 = vunpack.c.l.b16 %v1150
        %v1173 = vunpack.c.l.b16 %v1151
        %v1174 = vunpack.c.l.b16 %v1152
        %v1175 = vunpack.c.l.b16 %v1153
        %v1176 = vpack.c.b16 %v1172, %v1171
        %v1177 = vpack.c.b16 %v1174, %v1173
        %v1178 = vpack.c.b16 %v1175, %v1175
        %v1182 = vsel %vm505, %v1162, 0
        %v1185 = vsel %vm505, %v1163, 0
        %v1188 = vsel %vm505, %v1164, 0
        %v1191 = vsel %vm505, %v1165, 0
        %v1194 = vsel %vm518, %v1178, 0
        %1196 = vmatprep.subr.bf16.mxu0 0
        %1197 = vmatpush1.bf16.msra.mxu0 0
        %1198 = vmatprep.subr.bf16.mxu0 0
        %1199 = vmatpush1.bf16.msra.mxu0 0
        %1200 = vmatprep.subr.bf16.mxu0 0
        %1201 = vmatpush1.bf16.msra.mxu0 0
        %1202 = vmatprep.subr.bf16.mxu0 0
        %1203 = vmatpush1.bf16.msra.mxu0 0
        %1204 = vmatprep.subr.bf16.mxu0 0
        %1205 = vmatpush1.bf16.msra.mxu0 0
        %1206 = vmatprep.subr.bf16.mxu0 0
        %1207 = vmatpush1.bf16.msra.mxu0 %v1194
        %1208 = vmatprep.subr.bf16.mxu0 0
        %1209 = vmatpush1.bf16.msra.mxu0 %v1177
        %1210 = vmatprep.subr.bf16.mxu0 0
        %1211 = vmatpush1.bf16.msra.mxu0 %v1176
        %1212 = vmatprep.subr.bf16.mxu0 0
        %1213 = vmatpush2.bf16.msra.mxu0 0
        %1214 = vmatprep.subr.bf16.mxu0 0
        %1215 = vmatpush2.bf16.msra.mxu0 0
        %1216 = vmatprep.subr.bf16.mxu0 0
        %1217 = vmatpush2.bf16.msra.mxu0 0
        %1218 = vmatprep.subr.bf16.mxu0 0
        %1219 = vmatpush2.bf16.msra.mxu0 0
        %1220 = vmatprep.subr.bf16.mxu0 0
        %1221 = vmatpush2.bf16.msra.mxu0 0
        %1222 = vmatprep.subr.bf16.mxu0 0
        %1223 = vmatpush2.bf16.msra.mxu0 0
        %1224 = vmatprep.subr.bf16.mxu0 0
        %1225 = vmatpush2.bf16.msra.mxu0 0
        %1226 = vmatprep.subr.bf16.mxu0 0
        %1227 = vmatpush2.bf16.msra.mxu0 0
        %1228 = vmatprep.mubr.bf16.mxu0 0
        %1229 = vmatmul.mubr.bf16.gmra.mxu0 %v1182
        %v1230 = vpop.f32.mrf.mxu0
        %v1231 = vadd.f32 0.0, %v1230
        %v1232 = vpop.f32.mrf.mxu0
        %v1233 = vpop.f32.mrf.mxu0
        %v1234 = vadd.f32 0.0, %v1233
        %v1235 = vpop.f32.mrf.mxu0
        %1236 = vmatprep.mubr.bf16.mxu0 0
        %1237 = vmatmul.mubr.bf16.gmra.mxu0 %v1185
        %v1238 = vpop.f32.mrf.mxu0
        %v1239 = vadd.f32 0.0, %v1238
        %v1240 = vpop.f32.mrf.mxu0
        %v1241 = vpop.f32.mrf.mxu0
        %v1242 = vadd.f32 0.0, %v1241
        %v1243 = vpop.f32.mrf.mxu0
        %1244 = vmatprep.mubr.bf16.mxu0 0
        %1245 = vmatmul.mubr.bf16.gmra.mxu0 %v1188
        %v1246 = vpop.f32.mrf.mxu0
        %v1247 = vadd.f32 0.0, %v1246
        %v1248 = vpop.f32.mrf.mxu0
        %v1249 = vpop.f32.mrf.mxu0
        %v1250 = vadd.f32 0.0, %v1249
        %v1251 = vpop.f32.mrf.mxu0
        %1252 = vmatprep.mubr.bf16.mxu0 0
        %1253 = vmatmul.mubr.bf16.gmra.mxu0 %v1191
        %v1254 = vpop.f32.mrf.mxu0
        %v1255 = vadd.f32 0.0, %v1254
        %v1256 = vpop.f32.mrf.mxu0
        %v1257 = vpop.f32.mrf.mxu0
        %v1258 = vadd.f32 0.0, %v1257
        %v1259 = vpop.f32.mrf.mxu0
        %1260 = vdwg.mxu0
        %v1261 = vadd.f32 %v1012, %v1231
        %v1262 = vadd.f32 %v1013, %v1234
        %v1263 = vadd.f32 %v1014, %v1239
        %v1264 = vadd.f32 %v1015, %v1242
        %v1265 = vadd.f32 %v1016, %v1247
        %v1266 = vadd.f32 %v1017, %v1250
        %v1267 = vadd.f32 %v1018, %v1255
        %v1268 = vadd.f32 %v1019, %v1258
        %v1269 = vld [vmem:[%s882] sm:$0xe]
        %v1270 = vld [vmem:[%s882 + $0x8] sm:$0xe]
        %v1271 = vld [vmem:[%s882 + $0x10] sm:$0xe]
        %v1272 = vld [vmem:[%s882 + $0x18] sm:$0xe]
        %v1273 = vld [vmem:[%s882 + $0x20] sm:$0xe]
        %v1274 = vld [vmem:[%s882 + $0x28] sm:$0xe]
        %v1275 = vld [vmem:[%s882 + $0x30] sm:$0xe]
        %v1276 = vld [vmem:[%s882 + $0x38] sm:$0xe]
        %v1293 = vrot.slane %v1269, 5
        %v1294 = vrot.slane %v1293, 4
        %v1295 = vrot.slane %v1021, 5
        %v1296 = vsel %vm728, %v1294, %v1295
        %v1297 = vrot.slane %v1270, 5
        %v1298 = vrot.slane %v1297, 4
        %v1299 = vrot.slane %v1023, 5
        %v1300 = vsel %vm728, %v1298, %v1299
        %v1301 = vrot.slane %v1271, 5
        %v1302 = vrot.slane %v1301, 4
        %v1303 = vrot.slane %v1025, 5
        %v1304 = vsel %vm728, %v1302, %v1303
        %v1305 = vrot.slane %v1272, 5
        %v1306 = vrot.slane %v1305, 4
        %v1307 = vrot.slane %v1027, 5
        %v1308 = vsel %vm728, %v1306, %v1307
        %v1309 = vrot.slane %v1273, 5
        %v1310 = vrot.slane %v1309, 4
        %v1311 = vrot.slane %v1029, 5
        %v1312 = vsel %vm728, %v1310, %v1311
        %v1313 = vrot.slane %v1274, 5
        %v1314 = vrot.slane %v1313, 4
        %v1315 = vrot.slane %v1031, 5
        %v1316 = vsel %vm728, %v1314, %v1315
        %v1317 = vrot.slane %v1275, 5
        %v1318 = vrot.slane %v1317, 4
        %v1319 = vrot.slane %v1033, 5
        %v1320 = vsel %vm728, %v1318, %v1319
        %v1321 = vrot.slane %v1276, 5
        %v1322 = vrot.slane %v1321, 4
        %v1323 = vrot.slane %v1035, 5
        %v1324 = vsel %vm728, %v1322, %v1323
        %s1325 = scalar_lea.vmem %s2, 100
        %v1326 = vld [vmem:[%s1325] sm:$0xf]
        %v1327 = vld [vmem:[%s1325 + $0x4] sm:$0xf]
        %v1328 = vld [vmem:[%s1325 + $0x8] sm:$0xf]
        %v1329 = vld [vmem:[%s1325 + $0xc] sm:$0xf]
        %v1330 = vld [vmem:[%s1325 + $0x10] sm:$0x3]
        %v1331 = vunpack.c.l.b16 %v1296
        %v1332 = vunpack.c.l.b16 %v1300
        %v1333 = vunpack.c.l.b16 %v1304
        %v1334 = vunpack.c.l.b16 %v1308
        %v1335 = vunpack.c.l.b16 %v1312
        %v1336 = vunpack.c.l.b16 %v1316
        %v1337 = vunpack.c.l.b16 %v1320
        %v1338 = vunpack.c.l.b16 %v1324
        %v1339 = vpack.c.b16 %v1332, %v1331
        %v1340 = vpack.c.b16 %v1334, %v1333
        %v1341 = vpack.c.b16 %v1336, %v1335
        %v1342 = vpack.c.b16 %v1338, %v1337
        %v1348 = vunpack.c.l.b16 %v1326
        %v1349 = vunpack.c.l.b16 %v1327
        %v1350 = vunpack.c.l.b16 %v1328
        %v1351 = vunpack.c.l.b16 %v1329
        %v1352 = vunpack.c.l.b16 %v1330
        %v1353 = vpack.c.b16 %v1349, %v1348
        %v1354 = vpack.c.b16 %v1351, %v1350
        %v1355 = vpack.c.b16 %v1352, %v1352
        %v1359 = vsel %vm505, %v1339, 0
        %v1362 = vsel %vm505, %v1340, 0
        %v1365 = vsel %vm505, %v1341, 0
        %v1368 = vsel %vm505, %v1342, 0
        %v1371 = vsel %vm518, %v1355, 0
        %1373 = vmatprep.subr.bf16.mxu0 0
        %1374 = vmatpush1.bf16.msra.mxu0 0
        %1375 = vmatprep.subr.bf16.mxu0 0
        %1376 = vmatpush1.bf16.msra.mxu0 0
        %1377 = vmatprep.subr.bf16.mxu0 0
        %1378 = vmatpush1.bf16.msra.mxu0 0
        %1379 = vmatprep.subr.bf16.mxu0 0
        %1380 = vmatpush1.bf16.msra.mxu0 0
        %1381 = vmatprep.subr.bf16.mxu0 0
        %1382 = vmatpush1.bf16.msra.mxu0 0
        %1383 = vmatprep.subr.bf16.mxu0 0
        %1384 = vmatpush1.bf16.msra.mxu0 %v1371
        %1385 = vmatprep.subr.bf16.mxu0 0
        %1386 = vmatpush1.bf16.msra.mxu0 %v1354
        %1387 = vmatprep.subr.bf16.mxu0 0
        %1388 = vmatpush1.bf16.msra.mxu0 %v1353
        %1389 = vmatprep.subr.bf16.mxu0 0
        %1390 = vmatpush2.bf16.msra.mxu0 0
        %1391 = vmatprep.subr.bf16.mxu0 0
        %1392 = vmatpush2.bf16.msra.mxu0 0
        %1393 = vmatprep.subr.bf16.mxu0 0
        %1394 = vmatpush2.bf16.msra.mxu0 0
        %1395 = vmatprep.subr.bf16.mxu0 0
        %1396 = vmatpush2.bf16.msra.mxu0 0
        %1397 = vmatprep.subr.bf16.mxu0 0
        %1398 = vmatpush2.bf16.msra.mxu0 0
        %1399 = vmatprep.subr.bf16.mxu0 0
        %1400 = vmatpush2.bf16.msra.mxu0 0
        %1401 = vmatprep.subr.bf16.mxu0 0
        %1402 = vmatpush2.bf16.msra.mxu0 0
        %1403 = vmatprep.subr.bf16.mxu0 0
        %1404 = vmatpush2.bf16.msra.mxu0 0
        %1405 = vmatprep.mubr.bf16.mxu0 0
        %1406 = vmatmul.mubr.bf16.gmra.mxu0 %v1359
        %v1407 = vpop.f32.mrf.mxu0
        %v1408 = vadd.f32 0.0, %v1407
        %v1409 = vpop.f32.mrf.mxu0
        %v1410 = vpop.f32.mrf.mxu0
        %v1411 = vadd.f32 0.0, %v1410
        %v1412 = vpop.f32.mrf.mxu0
        %1413 = vmatprep.mubr.bf16.mxu0 0
        %1414 = vmatmul.mubr.bf16.gmra.mxu0 %v1362
        %v1415 = vpop.f32.mrf.mxu0
        %v1416 = vadd.f32 0.0, %v1415
        %v1417 = vpop.f32.mrf.mxu0
        %v1418 = vpop.f32.mrf.mxu0
        %v1419 = vadd.f32 0.0, %v1418
        %v1420 = vpop.f32.mrf.mxu0
        %1421 = vmatprep.mubr.bf16.mxu0 0
        %1422 = vmatmul.mubr.bf16.gmra.mxu0 %v1365
        %v1423 = vpop.f32.mrf.mxu0
        %v1424 = vadd.f32 0.0, %v1423
        %v1425 = vpop.f32.mrf.mxu0
        %v1426 = vpop.f32.mrf.mxu0
        %v1427 = vadd.f32 0.0, %v1426
        %v1428 = vpop.f32.mrf.mxu0
        %1429 = vmatprep.mubr.bf16.mxu0 0
        %1430 = vmatmul.mubr.bf16.gmra.mxu0 %v1368
        %v1431 = vpop.f32.mrf.mxu0
        %v1432 = vadd.f32 0.0, %v1431
        %v1433 = vpop.f32.mrf.mxu0
        %v1434 = vpop.f32.mrf.mxu0
        %v1435 = vadd.f32 0.0, %v1434
        %v1436 = vpop.f32.mrf.mxu0
        %1437 = vdwg.mxu0
        %v1438 = vadd.f32 %v1261, %v1408
        %v1439 = vadd.f32 %v1262, %v1411
        %v1440 = vadd.f32 %v1263, %v1416
        %v1441 = vadd.f32 %v1264, %v1419
        %v1442 = vadd.f32 %v1265, %v1424
        %v1443 = vadd.f32 %v1266, %v1427
        %v1444 = vadd.f32 %v1267, %v1432
        %v1445 = vadd.f32 %v1268, %v1435
        %s1446 = scalar_lea.vmem %s329, 16
        %v1447 = vld [vmem:[%s1446] sm:$0xf]
        %v1448 = vld [vmem:[%s1446 + $0x8] sm:$0xf]
        %v1449 = vld [vmem:[%s1446 + $0x10] sm:$0xf]
        %v1450 = vld [vmem:[%s1446 + $0x18] sm:$0xf]
        %v1451 = vld [vmem:[%s1446 + $0x20] sm:$0xf]
        %v1452 = vld [vmem:[%s1446 + $0x28] sm:$0xf]
        %v1453 = vld [vmem:[%s1446 + $0x30] sm:$0xf]
        %v1454 = vld [vmem:[%s1446 + $0x38] sm:$0xf]
        %s1455 = scalar_lea.vmem %s2, 120
        %v1456 = vld [vmem:[%s1455] sm:$0xf]
        %v1457 = vld [vmem:[%s1455 + $0x4] sm:$0xf]
        %v1458 = vld [vmem:[%s1455 + $0x8] sm:$0xf]
        %v1459 = vld [vmem:[%s1455 + $0xc] sm:$0xf]
        %v1460 = vld [vmem:[%s1455 + $0x10] sm:$0x3]
        %v1469 = vunpack.c.l.b16 %v1447
        %v1470 = vunpack.c.l.b16 %v1448
        %v1471 = vunpack.c.l.b16 %v1449
        %v1472 = vunpack.c.l.b16 %v1450
        %v1473 = vunpack.c.l.b16 %v1451
        %v1474 = vunpack.c.l.b16 %v1452
        %v1475 = vunpack.c.l.b16 %v1453
        %v1476 = vunpack.c.l.b16 %v1454
        %v1477 = vpack.c.b16 %v1470, %v1469
        %v1478 = vpack.c.b16 %v1472, %v1471
        %v1479 = vpack.c.b16 %v1474, %v1473
        %v1480 = vpack.c.b16 %v1476, %v1475
        %v1486 = vunpack.c.l.b16 %v1456
        %v1487 = vunpack.c.l.b16 %v1457
        %v1488 = vunpack.c.l.b16 %v1458
        %v1489 = vunpack.c.l.b16 %v1459
        %v1490 = vunpack.c.l.b16 %v1460
        %v1491 = vpack.c.b16 %v1487, %v1486
        %v1492 = vpack.c.b16 %v1489, %v1488
        %v1493 = vpack.c.b16 %v1490, %v1490
        %v1497 = vsel %vm505, %v1477, 0
        %v1500 = vsel %vm505, %v1478, 0
        %v1503 = vsel %vm505, %v1479, 0
        %v1506 = vsel %vm505, %v1480, 0
        %v1509 = vsel %vm518, %v1493, 0
        %1511 = vmatprep.subr.bf16.mxu0 0
        %1512 = vmatpush1.bf16.msra.mxu0 0
        %1513 = vmatprep.subr.bf16.mxu0 0
        %1514 = vmatpush1.bf16.msra.mxu0 0
        %1515 = vmatprep.subr.bf16.mxu0 0
        %1516 = vmatpush1.bf16.msra.mxu0 0
        %1517 = vmatprep.subr.bf16.mxu0 0
        %1518 = vmatpush1.bf16.msra.mxu0 0
        %1519 = vmatprep.subr.bf16.mxu0 0
        %1520 = vmatpush1.bf16.msra.mxu0 0
        %1521 = vmatprep.subr.bf16.mxu0 0
        %1522 = vmatpush1.bf16.msra.mxu0 %v1509
        %1523 = vmatprep.subr.bf16.mxu0 0
        %1524 = vmatpush1.bf16.msra.mxu0 %v1492
        %1525 = vmatprep.subr.bf16.mxu0 0
        %1526 = vmatpush1.bf16.msra.mxu0 %v1491
        %1527 = vmatprep.subr.bf16.mxu0 0
        %1528 = vmatpush2.bf16.msra.mxu0 0
        %1529 = vmatprep.subr.bf16.mxu0 0
        %1530 = vmatpush2.bf16.msra.mxu0 0
        %1531 = vmatprep.subr.bf16.mxu0 0
        %1532 = vmatpush2.bf16.msra.mxu0 0
        %1533 = vmatprep.subr.bf16.mxu0 0
        %1534 = vmatpush2.bf16.msra.mxu0 0
        %1535 = vmatprep.subr.bf16.mxu0 0
        %1536 = vmatpush2.bf16.msra.mxu0 0
        %1537 = vmatprep.subr.bf16.mxu0 0
        %1538 = vmatpush2.bf16.msra.mxu0 0
        %1539 = vmatprep.subr.bf16.mxu0 0
        %1540 = vmatpush2.bf16.msra.mxu0 0
        %1541 = vmatprep.subr.bf16.mxu0 0
        %1542 = vmatpush2.bf16.msra.mxu0 0
        %1543 = vmatprep.mubr.bf16.mxu0 0
        %1544 = vmatmul.mubr.bf16.gmra.mxu0 %v1497
        %v1545 = vpop.f32.mrf.mxu0
        %v1546 = vadd.f32 0.0, %v1545
        %v1547 = vpop.f32.mrf.mxu0
        %v1548 = vpop.f32.mrf.mxu0
        %v1549 = vadd.f32 0.0, %v1548
        %v1550 = vpop.f32.mrf.mxu0
        %1551 = vmatprep.mubr.bf16.mxu0 0
        %1552 = vmatmul.mubr.bf16.gmra.mxu0 %v1500
        %v1553 = vpop.f32.mrf.mxu0
        %v1554 = vadd.f32 0.0, %v1553
        %v1555 = vpop.f32.mrf.mxu0
        %v1556 = vpop.f32.mrf.mxu0
        %v1557 = vadd.f32 0.0, %v1556
        %v1558 = vpop.f32.mrf.mxu0
        %1559 = vmatprep.mubr.bf16.mxu0 0
        %1560 = vmatmul.mubr.bf16.gmra.mxu0 %v1503
        %v1561 = vpop.f32.mrf.mxu0
        %v1562 = vadd.f32 0.0, %v1561
        %v1563 = vpop.f32.mrf.mxu0
        %v1564 = vpop.f32.mrf.mxu0
        %v1565 = vadd.f32 0.0, %v1564
        %v1566 = vpop.f32.mrf.mxu0
        %1567 = vmatprep.mubr.bf16.mxu0 0
        %1568 = vmatmul.mubr.bf16.gmra.mxu0 %v1506
        %v1569 = vpop.f32.mrf.mxu0
        %v1570 = vadd.f32 0.0, %v1569
        %v1571 = vpop.f32.mrf.mxu0
        %v1572 = vpop.f32.mrf.mxu0
        %v1573 = vadd.f32 0.0, %v1572
        %v1574 = vpop.f32.mrf.mxu0
        %1575 = vdwg.mxu0
        %v1576 = vadd.f32 %v1438, %v1546
        %v1577 = vadd.f32 %v1439, %v1549
        %v1578 = vadd.f32 %v1440, %v1554
        %v1579 = vadd.f32 %v1441, %v1557
        %v1580 = vadd.f32 %v1442, %v1562
        %v1581 = vadd.f32 %v1443, %v1565
        %v1582 = vadd.f32 %v1444, %v1570
        %v1583 = vadd.f32 %v1445, %v1573
        %v1584 = vld [vmem:[%s1446] sm:$0xf]
        %v1585 = vld [vmem:[%s1446 + $0x4] sm:$0x1]
        %v1586 = vld [vmem:[%s1446 + $0x8] sm:$0xf]
        %v1587 = vld [vmem:[%s1446 + $0xc] sm:$0x1]
        %v1588 = vld [vmem:[%s1446 + $0x10] sm:$0xf]
        %v1589 = vld [vmem:[%s1446 + $0x14] sm:$0x1]
        %v1590 = vld [vmem:[%s1446 + $0x18] sm:$0xf]
        %v1591 = vld [vmem:[%s1446 + $0x1c] sm:$0x1]
        %v1592 = vld [vmem:[%s1446 + $0x20] sm:$0xf]
        %v1593 = vld [vmem:[%s1446 + $0x24] sm:$0x1]
        %v1594 = vld [vmem:[%s1446 + $0x28] sm:$0xf]
        %v1595 = vld [vmem:[%s1446 + $0x2c] sm:$0x1]
        %v1596 = vld [vmem:[%s1446 + $0x30] sm:$0xf]
        %v1597 = vld [vmem:[%s1446 + $0x34] sm:$0x1]
        %v1598 = vld [vmem:[%s1446 + $0x38] sm:$0xf]
        %v1599 = vld [vmem:[%s1446 + $0x3c] sm:$0x1]
        %v1601 = vshrl.u32 %v1584, 16
        %v1603 = vrot.slane %v1601, 4
        %v1604 = vshll.u32 %v1584, 16
        %v1606 = vrot.slane %v1604, 5
        %v1607 = vor.u32 %v1603, %v1606
        %v1608 = vrot.slane %v1607, 4
        %v1610 = vshll.u32 %v1585, 16
        %v1612 = vrot.slane %v1610, 5
        %v1613 = vsel %vm359, %v1608, %v1612
        %v1615 = vshrl.u32 %v1586, 16
        %v1617 = vrot.slane %v1615, 4
        %v1618 = vshll.u32 %v1586, 16
        %v1620 = vrot.slane %v1618, 5
        %v1621 = vor.u32 %v1617, %v1620
        %v1622 = vrot.slane %v1621, 4
        %v1624 = vshll.u32 %v1587, 16
        %v1626 = vrot.slane %v1624, 5
        %v1627 = vsel %vm359, %v1622, %v1626
        %v1629 = vshrl.u32 %v1588, 16
        %v1631 = vrot.slane %v1629, 4
        %v1632 = vshll.u32 %v1588, 16
        %v1634 = vrot.slane %v1632, 5
        %v1635 = vor.u32 %v1631, %v1634
        %v1636 = vrot.slane %v1635, 4
        %v1638 = vshll.u32 %v1589, 16
        %v1640 = vrot.slane %v1638, 5
        %v1641 = vsel %vm359, %v1636, %v1640
        %v1643 = vshrl.u32 %v1590, 16
        %v1645 = vrot.slane %v1643, 4
        %v1646 = vshll.u32 %v1590, 16
        %v1648 = vrot.slane %v1646, 5
        %v1649 = vor.u32 %v1645, %v1648
        %v1650 = vrot.slane %v1649, 4
        %v1652 = vshll.u32 %v1591, 16
        %v1654 = vrot.slane %v1652, 5
        %v1655 = vsel %vm359, %v1650, %v1654
        %v1657 = vshrl.u32 %v1592, 16
        %v1659 = vrot.slane %v1657, 4
        %v1660 = vshll.u32 %v1592, 16
        %v1662 = vrot.slane %v1660, 5
        %v1663 = vor.u32 %v1659, %v1662
        %v1664 = vrot.slane %v1663, 4
        %v1666 = vshll.u32 %v1593, 16
        %v1668 = vrot.slane %v1666, 5
        %v1669 = vsel %vm359, %v1664, %v1668
        %v1671 = vshrl.u32 %v1594, 16
        %v1673 = vrot.slane %v1671, 4
        %v1674 = vshll.u32 %v1594, 16
        %v1676 = vrot.slane %v1674, 5
        %v1677 = vor.u32 %v1673, %v1676
        %v1678 = vrot.slane %v1677, 4
        %v1680 = vshll.u32 %v1595, 16
        %v1682 = vrot.slane %v1680, 5
        %v1683 = vsel %vm359, %v1678, %v1682
        %v1685 = vshrl.u32 %v1596, 16
        %v1687 = vrot.slane %v1685, 4
        %v1688 = vshll.u32 %v1596, 16
        %v1690 = vrot.slane %v1688, 5
        %v1691 = vor.u32 %v1687, %v1690
        %v1692 = vrot.slane %v1691, 4
        %v1694 = vshll.u32 %v1597, 16
        %v1696 = vrot.slane %v1694, 5
        %v1697 = vsel %vm359, %v1692, %v1696
        %v1699 = vshrl.u32 %v1598, 16
        %v1701 = vrot.slane %v1699, 4
        %v1702 = vshll.u32 %v1598, 16
        %v1704 = vrot.slane %v1702, 5
        %v1705 = vor.u32 %v1701, %v1704
        %v1706 = vrot.slane %v1705, 4
        %v1708 = vshll.u32 %v1599, 16
        %v1710 = vrot.slane %v1708, 5
        %v1711 = vsel %vm359, %v1706, %v1710
        %s1712 = scalar_lea.vmem %s2, 140
        %v1713 = vld [vmem:[%s1712] sm:$0xf]
        %v1714 = vld [vmem:[%s1712 + $0x4] sm:$0xf]
        %v1715 = vld [vmem:[%s1712 + $0x8] sm:$0xf]
        %v1716 = vld [vmem:[%s1712 + $0xc] sm:$0xf]
        %v1717 = vld [vmem:[%s1712 + $0x10] sm:$0x3]
        %v1718 = vunpack.c.l.b16 %v1613
        %v1719 = vunpack.c.l.b16 %v1627
        %v1720 = vunpack.c.l.b16 %v1641
        %v1721 = vunpack.c.l.b16 %v1655
        %v1722 = vunpack.c.l.b16 %v1669
        %v1723 = vunpack.c.l.b16 %v1683
        %v1724 = vunpack.c.l.b16 %v1697
        %v1725 = vunpack.c.l.b16 %v1711
        %v1726 = vpack.c.b16 %v1719, %v1718
        %v1727 = vpack.c.b16 %v1721, %v1720
        %v1728 = vpack.c.b16 %v1723, %v1722
        %v1729 = vpack.c.b16 %v1725, %v1724
        %v1735 = vunpack.c.l.b16 %v1713
        %v1736 = vunpack.c.l.b16 %v1714
        %v1737 = vunpack.c.l.b16 %v1715
        %v1738 = vunpack.c.l.b16 %v1716
        %v1739 = vunpack.c.l.b16 %v1717
        %v1740 = vpack.c.b16 %v1736, %v1735
        %v1741 = vpack.c.b16 %v1738, %v1737
        %v1742 = vpack.c.b16 %v1739, %v1739
        %v1746 = vsel %vm505, %v1726, 0
        %v1749 = vsel %vm505, %v1727, 0
        %v1752 = vsel %vm505, %v1728, 0
        %v1755 = vsel %vm505, %v1729, 0
        %v1758 = vsel %vm518, %v1742, 0
        %1760 = vmatprep.subr.bf16.mxu0 0
        %1761 = vmatpush1.bf16.msra.mxu0 0
        %1762 = vmatprep.subr.bf16.mxu0 0
        %1763 = vmatpush1.bf16.msra.mxu0 0
        %1764 = vmatprep.subr.bf16.mxu0 0
        %1765 = vmatpush1.bf16.msra.mxu0 0
        %1766 = vmatprep.subr.bf16.mxu0 0
        %1767 = vmatpush1.bf16.msra.mxu0 0
        %1768 = vmatprep.subr.bf16.mxu0 0
        %1769 = vmatpush1.bf16.msra.mxu0 0
        %1770 = vmatprep.subr.bf16.mxu0 0
        %1771 = vmatpush1.bf16.msra.mxu0 %v1758
        %1772 = vmatprep.subr.bf16.mxu0 0
        %1773 = vmatpush1.bf16.msra.mxu0 %v1741
        %1774 = vmatprep.subr.bf16.mxu0 0
        %1775 = vmatpush1.bf16.msra.mxu0 %v1740
        %1776 = vmatprep.subr.bf16.mxu0 0
        %1777 = vmatpush2.bf16.msra.mxu0 0
        %1778 = vmatprep.subr.bf16.mxu0 0
        %1779 = vmatpush2.bf16.msra.mxu0 0
        %1780 = vmatprep.subr.bf16.mxu0 0
        %1781 = vmatpush2.bf16.msra.mxu0 0
        %1782 = vmatprep.subr.bf16.mxu0 0
        %1783 = vmatpush2.bf16.msra.mxu0 0
        %1784 = vmatprep.subr.bf16.mxu0 0
        %1785 = vmatpush2.bf16.msra.mxu0 0
        %1786 = vmatprep.subr.bf16.mxu0 0
        %1787 = vmatpush2.bf16.msra.mxu0 0
        %1788 = vmatprep.subr.bf16.mxu0 0
        %1789 = vmatpush2.bf16.msra.mxu0 0
        %1790 = vmatprep.subr.bf16.mxu0 0
        %1791 = vmatpush2.bf16.msra.mxu0 0
        %1792 = vmatprep.mubr.bf16.mxu0 0
        %1793 = vmatmul.mubr.bf16.gmra.mxu0 %v1746
        %v1794 = vpop.f32.mrf.mxu0
        %v1795 = vadd.f32 0.0, %v1794
        %v1796 = vpop.f32.mrf.mxu0
        %v1797 = vpop.f32.mrf.mxu0
        %v1798 = vadd.f32 0.0, %v1797
        %v1799 = vpop.f32.mrf.mxu0
        %1800 = vmatprep.mubr.bf16.mxu0 0
        %1801 = vmatmul.mubr.bf16.gmra.mxu0 %v1749
        %v1802 = vpop.f32.mrf.mxu0
        %v1803 = vadd.f32 0.0, %v1802
        %v1804 = vpop.f32.mrf.mxu0
        %v1805 = vpop.f32.mrf.mxu0
        %v1806 = vadd.f32 0.0, %v1805
        %v1807 = vpop.f32.mrf.mxu0
        %1808 = vmatprep.mubr.bf16.mxu0 0
        %1809 = vmatmul.mubr.bf16.gmra.mxu0 %v1752
        %v1810 = vpop.f32.mrf.mxu0
        %v1811 = vadd.f32 0.0, %v1810
        %v1812 = vpop.f32.mrf.mxu0
        %v1813 = vpop.f32.mrf.mxu0
        %v1814 = vadd.f32 0.0, %v1813
        %v1815 = vpop.f32.mrf.mxu0
        %1816 = vmatprep.mubr.bf16.mxu0 0
        %1817 = vmatmul.mubr.bf16.gmra.mxu0 %v1755
        %v1818 = vpop.f32.mrf.mxu0
        %v1819 = vadd.f32 0.0, %v1818
        %v1820 = vpop.f32.mrf.mxu0
        %v1821 = vpop.f32.mrf.mxu0
        %v1822 = vadd.f32 0.0, %v1821
        %v1823 = vpop.f32.mrf.mxu0
        %1824 = vdwg.mxu0
        %v1825 = vadd.f32 %v1576, %v1795
        %v1826 = vadd.f32 %v1577, %v1798
        %v1827 = vadd.f32 %v1578, %v1803
        %v1828 = vadd.f32 %v1579, %v1806
        %v1829 = vadd.f32 %v1580, %v1811
        %v1830 = vadd.f32 %v1581, %v1814
        %v1831 = vadd.f32 %v1582, %v1819
        %v1832 = vadd.f32 %v1583, %v1822
        %v1833 = vld [vmem:[%s1446] sm:$0xe]
        %v1834 = vld [vmem:[%s1446 + $0x8] sm:$0xe]
        %v1835 = vld [vmem:[%s1446 + $0x10] sm:$0xe]
        %v1836 = vld [vmem:[%s1446 + $0x18] sm:$0xe]
        %v1837 = vld [vmem:[%s1446 + $0x20] sm:$0xe]
        %v1838 = vld [vmem:[%s1446 + $0x28] sm:$0xe]
        %v1839 = vld [vmem:[%s1446 + $0x30] sm:$0xe]
        %v1840 = vld [vmem:[%s1446 + $0x38] sm:$0xe]
        %v1857 = vrot.slane %v1833, 5
        %v1858 = vrot.slane %v1857, 4
        %v1859 = vrot.slane %v1585, 5
        %v1860 = vsel %vm728, %v1858, %v1859
        %v1861 = vrot.slane %v1834, 5
        %v1862 = vrot.slane %v1861, 4
        %v1863 = vrot.slane %v1587, 5
        %v1864 = vsel %vm728, %v1862, %v1863
        %v1865 = vrot.slane %v1835, 5
        %v1866 = vrot.slane %v1865, 4
        %v1867 = vrot.slane %v1589, 5
        %v1868 = vsel %vm728, %v1866, %v1867
        %v1869 = vrot.slane %v1836, 5
        %v1870 = vrot.slane %v1869, 4
        %v1871 = vrot.slane %v1591, 5
        %v1872 = vsel %vm728, %v1870, %v1871
        %v1873 = vrot.slane %v1837, 5
        %v1874 = vrot.slane %v1873, 4
        %v1875 = vrot.slane %v1593, 5
        %v1876 = vsel %vm728, %v1874, %v1875
        %v1877 = vrot.slane %v1838, 5
        %v1878 = vrot.slane %v1877, 4
        %v1879 = vrot.slane %v1595, 5
        %v1880 = vsel %vm728, %v1878, %v1879
        %v1881 = vrot.slane %v1839, 5
        %v1882 = vrot.slane %v1881, 4
        %v1883 = vrot.slane %v1597, 5
        %v1884 = vsel %vm728, %v1882, %v1883
        %v1885 = vrot.slane %v1840, 5
        %v1886 = vrot.slane %v1885, 4
        %v1887 = vrot.slane %v1599, 5
        %v1888 = vsel %vm728, %v1886, %v1887
        %s1889 = scalar_lea.vmem %s2, 160
        %v1890 = vld [vmem:[%s1889] sm:$0xf]
        %v1891 = vld [vmem:[%s1889 + $0x4] sm:$0xf]
        %v1892 = vld [vmem:[%s1889 + $0x8] sm:$0xf]
        %v1893 = vld [vmem:[%s1889 + $0xc] sm:$0xf]
        %v1894 = vld [vmem:[%s1889 + $0x10] sm:$0x3]
        %v1895 = vunpack.c.l.b16 %v1860
        %v1896 = vunpack.c.l.b16 %v1864
        %v1897 = vunpack.c.l.b16 %v1868
        %v1898 = vunpack.c.l.b16 %v1872
        %v1899 = vunpack.c.l.b16 %v1876
        %v1900 = vunpack.c.l.b16 %v1880
        %v1901 = vunpack.c.l.b16 %v1884
        %v1902 = vunpack.c.l.b16 %v1888
        %v1903 = vpack.c.b16 %v1896, %v1895
        %v1904 = vpack.c.b16 %v1898, %v1897
        %v1905 = vpack.c.b16 %v1900, %v1899
        %v1906 = vpack.c.b16 %v1902, %v1901
        %v1912 = vunpack.c.l.b16 %v1890
        %v1913 = vunpack.c.l.b16 %v1891
        %v1914 = vunpack.c.l.b16 %v1892
        %v1915 = vunpack.c.l.b16 %v1893
        %v1916 = vunpack.c.l.b16 %v1894
        %v1917 = vpack.c.b16 %v1913, %v1912
        %v1918 = vpack.c.b16 %v1915, %v1914
        %v1919 = vpack.c.b16 %v1916, %v1916
        %v1923 = vsel %vm505, %v1903, 0
        %v1926 = vsel %vm505, %v1904, 0
        %v1929 = vsel %vm505, %v1905, 0
        %v1932 = vsel %vm505, %v1906, 0
        %v1935 = vsel %vm518, %v1919, 0
        %1937 = vmatprep.subr.bf16.mxu0 0
        %1938 = vmatpush1.bf16.msra.mxu0 0
        %1939 = vmatprep.subr.bf16.mxu0 0
        %1940 = vmatpush1.bf16.msra.mxu0 0
        %1941 = vmatprep.subr.bf16.mxu0 0
        %1942 = vmatpush1.bf16.msra.mxu0 0
        %1943 = vmatprep.subr.bf16.mxu0 0
        %1944 = vmatpush1.bf16.msra.mxu0 0
        %1945 = vmatprep.subr.bf16.mxu0 0
        %1946 = vmatpush1.bf16.msra.mxu0 0
        %1947 = vmatprep.subr.bf16.mxu0 0
        %1948 = vmatpush1.bf16.msra.mxu0 %v1935
        %1949 = vmatprep.subr.bf16.mxu0 0
        %1950 = vmatpush1.bf16.msra.mxu0 %v1918
        %1951 = vmatprep.subr.bf16.mxu0 0
        %1952 = vmatpush1.bf16.msra.mxu0 %v1917
        %1953 = vmatprep.subr.bf16.mxu0 0
        %1954 = vmatpush2.bf16.msra.mxu0 0
        %1955 = vmatprep.subr.bf16.mxu0 0
        %1956 = vmatpush2.bf16.msra.mxu0 0
        %1957 = vmatprep.subr.bf16.mxu0 0
        %1958 = vmatpush2.bf16.msra.mxu0 0
        %1959 = vmatprep.subr.bf16.mxu0 0
        %1960 = vmatpush2.bf16.msra.mxu0 0
        %1961 = vmatprep.subr.bf16.mxu0 0
        %1962 = vmatpush2.bf16.msra.mxu0 0
        %1963 = vmatprep.subr.bf16.mxu0 0
        %1964 = vmatpush2.bf16.msra.mxu0 0
        %1965 = vmatprep.subr.bf16.mxu0 0
        %1966 = vmatpush2.bf16.msra.mxu0 0
        %1967 = vmatprep.subr.bf16.mxu0 0
        %1968 = vmatpush2.bf16.msra.mxu0 0
        %1969 = vmatprep.mubr.bf16.mxu0 0
        %1970 = vmatmul.mubr.bf16.gmra.mxu0 %v1923
        %v1971 = vpop.f32.mrf.mxu0
        %v1972 = vadd.f32 0.0, %v1971
        %v1973 = vpop.f32.mrf.mxu0
        %v1974 = vpop.f32.mrf.mxu0
        %v1975 = vadd.f32 0.0, %v1974
        %v1976 = vpop.f32.mrf.mxu0
        %1977 = vmatprep.mubr.bf16.mxu0 0
        %1978 = vmatmul.mubr.bf16.gmra.mxu0 %v1926
        %v1979 = vpop.f32.mrf.mxu0
        %v1980 = vadd.f32 0.0, %v1979
        %v1981 = vpop.f32.mrf.mxu0
        %v1982 = vpop.f32.mrf.mxu0
        %v1983 = vadd.f32 0.0, %v1982
        %v1984 = vpop.f32.mrf.mxu0
        %1985 = vmatprep.mubr.bf16.mxu0 0
        %1986 = vmatmul.mubr.bf16.gmra.mxu0 %v1929
        %v1987 = vpop.f32.mrf.mxu0
        %v1988 = vadd.f32 0.0, %v1987
        %v1989 = vpop.f32.mrf.mxu0
        %v1990 = vpop.f32.mrf.mxu0
        %v1991 = vadd.f32 0.0, %v1990
        %v1992 = vpop.f32.mrf.mxu0
        %1993 = vmatprep.mubr.bf16.mxu0 0
        %1994 = vmatmul.mubr.bf16.gmra.mxu0 %v1932
        %v1995 = vpop.f32.mrf.mxu0
        %v1996 = vadd.f32 0.0, %v1995
        %v1997 = vpop.f32.mrf.mxu0
        %v1998 = vpop.f32.mrf.mxu0
        %v1999 = vadd.f32 0.0, %v1998
        %v2000 = vpop.f32.mrf.mxu0
        %2001 = vdwg.mxu0
        %v2002 = vadd.f32 %v1825, %v1972
        %v2003 = vadd.f32 %v1826, %v1975
        %v2004 = vadd.f32 %v1827, %v1980
        %v2005 = vadd.f32 %v1828, %v1983
        %v2006 = vadd.f32 %v1829, %v1988
        %v2007 = vadd.f32 %v1830, %v1991
        %v2008 = vadd.f32 %v1831, %v1996
        %v2009 = vadd.f32 %v1832, %v1999
        %v2010 = vld [vmem:[%s3] sm:$0x1]
        %v2012 = vlaneseq
        %v2013 = vshrl.u32 %v2012, 7
        %v2014 = vsub.s32 0, %v2013
        %v2015 = vrot.slane %v2010, %v2014
        %v2017 = vadd.f32 %v2002, %v2015
        %v2018 = vadd.f32 %v2003, %v2015
        %v2019 = vadd.f32 %v2004, %v2015
        %v2020 = vadd.f32 %v2005, %v2015
        %v2021 = vadd.f32 %v2006, %v2015
        %v2022 = vadd.f32 %v2007, %v2015
        %v2023 = vadd.f32 %v2008, %v2015
        %v2024 = vadd.f32 %v2009, %v2015
        %v2025 = vld [vmem:[%s334] sm:$0xff]
        %v2026 = vld [vmem:[%s334 + $0x8] sm:$0xff]
        %v2027 = vld [vmem:[%s334 + $0x10] sm:$0xff]
        %v2028 = vld [vmem:[%s334 + $0x18] sm:$0xff]
        %v2029 = vld [vmem:[%s334 + $0x20] sm:$0xff]
        %v2030 = vld [vmem:[%s334 + $0x28] sm:$0xff]
        %v2031 = vld [vmem:[%s334 + $0x30] sm:$0xff]
        %v2032 = vld [vmem:[%s334 + $0x38] sm:$0xff]
        %v2033 = vld [vmem:[%s4] sm:$0xff]
        %v2034 = vld [vmem:[%s4 + $0x8] sm:$0xff]
        %v2035 = vld [vmem:[%s4 + $0x10] sm:$0xff]
        %v2036 = vld [vmem:[%s4 + $0x18] sm:$0xff]
        %v2037 = vld [vmem:[%s4 + $0x20] sm:$0xff]
        %v2038 = vld [vmem:[%s4 + $0x28] sm:$0xff]
        %v2039 = vld [vmem:[%s4 + $0x30] sm:$0xff]
        %v2040 = vld [vmem:[%s4 + $0x38] sm:$0xff]
        %v2041 = vmul.f32 %v2025, %v2033
        %v2042 = vmul.f32 %v2026, %v2034
        %v2043 = vmul.f32 %v2027, %v2035
        %v2044 = vmul.f32 %v2028, %v2036
        %v2045 = vmul.f32 %v2029, %v2037
        %v2046 = vmul.f32 %v2030, %v2038
        %v2047 = vmul.f32 %v2031, %v2039
        %v2048 = vmul.f32 %v2032, %v2040
        %v2049 = vadd.f32 %v2017, %v2041
        %v2050 = vadd.f32 %v2018, %v2042
        %v2051 = vadd.f32 %v2019, %v2043
        %v2052 = vadd.f32 %v2020, %v2044
        %v2053 = vadd.f32 %v2021, %v2045
        %v2054 = vadd.f32 %v2022, %v2046
        %v2055 = vadd.f32 %v2023, %v2047
        %v2056 = vadd.f32 %v2024, %v2048
        %v2057 = vsub.f32 0.0, %v2049
        %v2058 = vsub.f32 0.0, %v2050
        %v2059 = vsub.f32 0.0, %v2051
        %v2060 = vsub.f32 0.0, %v2052
        %v2061 = vsub.f32 0.0, %v2053
        %v2062 = vsub.f32 0.0, %v2054
        %v2063 = vsub.f32 0.0, %v2055
        %v2064 = vsub.f32 0.0, %v2056
        %v2065 = vmul.f32 %v2057, 1.442695
        %v2066 = vpow.pop %v2065
        %v2067 = vmul.f32 %v2058, 1.442695
        %v2068 = vpow.pop %v2067
        %v2069 = vmul.f32 %v2059, 1.442695
        %v2070 = vpow.pop %v2069
        %v2071 = vmul.f32 %v2060, 1.442695
        %v2072 = vpow.pop %v2071
        %v2073 = vmul.f32 %v2061, 1.442695
        %v2074 = vpow.pop %v2073
        %v2075 = vmul.f32 %v2062, 1.442695
        %v2076 = vpow.pop %v2075
        %v2077 = vmul.f32 %v2063, 1.442695
        %v2078 = vpow.pop %v2077
        %v2079 = vmul.f32 %v2064, 1.442695
        %v2080 = vpow.pop %v2079
        %v2081 = vadd.f32 %v2066, 1.0
        %v2082 = vadd.f32 %v2068, 1.0
        %v2083 = vadd.f32 %v2070, 1.0
        %v2084 = vadd.f32 %v2072, 1.0
        %v2085 = vadd.f32 %v2074, 1.0
        %v2086 = vadd.f32 %v2076, 1.0
        %v2087 = vadd.f32 %v2078, 1.0
        %v2088 = vadd.f32 %v2080, 1.0
        %v2089 = vrcp.pop %v2081
        %v2090 = vmul.f32 1.0, %v2089
        %v2091 = vrcp.pop %v2082
        %v2092 = vmul.f32 1.0, %v2091
        %v2093 = vrcp.pop %v2083
        %v2094 = vmul.f32 1.0, %v2093
        %v2095 = vrcp.pop %v2084
        %v2096 = vmul.f32 1.0, %v2095
        %v2097 = vrcp.pop %v2085
        %v2098 = vmul.f32 1.0, %v2097
        %v2099 = vrcp.pop %v2086
        %v2100 = vmul.f32 1.0, %v2099
        %v2101 = vrcp.pop %v2087
        %v2102 = vmul.f32 1.0, %v2101
        %v2103 = vrcp.pop %v2088
        %v2104 = vmul.f32 1.0, %v2103
        %v2105 = vld [vmem:[%s5] sm:$0xff]
        %v2106 = vld [vmem:[%s5 + $0x8] sm:$0xff]
        %v2107 = vld [vmem:[%s5 + $0x10] sm:$0xff]
        %v2108 = vld [vmem:[%s5 + $0x18] sm:$0xff]
        %v2109 = vld [vmem:[%s5 + $0x20] sm:$0xff]
        %v2110 = vld [vmem:[%s5 + $0x28] sm:$0xff]
        %v2111 = vld [vmem:[%s5 + $0x30] sm:$0xff]
        %v2112 = vld [vmem:[%s5 + $0x38] sm:$0xff]
        %v2113 = vmul.f32 %v2025, %v2105
        %v2114 = vmul.f32 %v2026, %v2106
        %v2115 = vmul.f32 %v2027, %v2107
        %v2116 = vmul.f32 %v2028, %v2108
        %v2117 = vmul.f32 %v2029, %v2109
        %v2118 = vmul.f32 %v2030, %v2110
        %v2119 = vmul.f32 %v2031, %v2111
        %v2120 = vmul.f32 %v2032, %v2112
        %2129 = vrot.lane.b32.xlu0 %v2113, 32
        %v2130 = vpop.permute.xlu0 %2129
        %2131 = vrot.lane.b32.xlu0 %v2114, 32
        %v2132 = vpop.permute.xlu0 %2131
        %2133 = vrot.lane.b32.xlu0 %v2115, 32
        %v2134 = vpop.permute.xlu0 %2133
        %2135 = vrot.lane.b32.xlu0 %v2116, 32
        %v2136 = vpop.permute.xlu0 %2135
        %2137 = vrot.lane.b32.xlu0 %v2117, 32
        %v2138 = vpop.permute.xlu0 %2137
        %2139 = vrot.lane.b32.xlu0 %v2118, 32
        %v2140 = vpop.permute.xlu0 %2139
        %2141 = vrot.lane.b32.xlu0 %v2119, 32
        %v2142 = vpop.permute.xlu0 %2141
        %2143 = vrot.lane.b32.xlu0 %v2120, 32
        %v2144 = vpop.permute.xlu0 %2143
        %v2153 = vadd.f32 %v2017, %v2130
        %v2154 = vadd.f32 %v2018, %v2132
        %v2155 = vadd.f32 %v2019, %v2134
        %v2156 = vadd.f32 %v2020, %v2136
        %v2157 = vadd.f32 %v2021, %v2138
        %v2158 = vadd.f32 %v2022, %v2140
        %v2159 = vadd.f32 %v2023, %v2142
        %v2160 = vadd.f32 %v2024, %v2144
        %v2161 = vsub.f32 0.0, %v2153
        %v2162 = vsub.f32 0.0, %v2154
        %v2163 = vsub.f32 0.0, %v2155
        %v2164 = vsub.f32 0.0, %v2156
        %v2165 = vsub.f32 0.0, %v2157
        %v2166 = vsub.f32 0.0, %v2158
        %v2167 = vsub.f32 0.0, %v2159
        %v2168 = vsub.f32 0.0, %v2160
        %v2169 = vmul.f32 %v2161, 1.442695
        %v2170 = vpow.pop %v2169
        %v2171 = vmul.f32 %v2162, 1.442695
        %v2172 = vpow.pop %v2171
        %v2173 = vmul.f32 %v2163, 1.442695
        %v2174 = vpow.pop %v2173
        %v2175 = vmul.f32 %v2164, 1.442695
        %v2176 = vpow.pop %v2175
        %v2177 = vmul.f32 %v2165, 1.442695
        %v2178 = vpow.pop %v2177
        %v2179 = vmul.f32 %v2166, 1.442695
        %v2180 = vpow.pop %v2179
        %v2181 = vmul.f32 %v2167, 1.442695
        %v2182 = vpow.pop %v2181
        %v2183 = vmul.f32 %v2168, 1.442695
        %v2184 = vpow.pop %v2183
        %v2185 = vadd.f32 %v2170, 1.0
        %v2186 = vadd.f32 %v2172, 1.0
        %v2187 = vadd.f32 %v2174, 1.0
        %v2188 = vadd.f32 %v2176, 1.0
        %v2189 = vadd.f32 %v2178, 1.0
        %v2190 = vadd.f32 %v2180, 1.0
        %v2191 = vadd.f32 %v2182, 1.0
        %v2192 = vadd.f32 %v2184, 1.0
        %v2193 = vrcp.pop %v2185
        %v2194 = vmul.f32 1.0, %v2193
        %v2195 = vrcp.pop %v2186
        %v2196 = vmul.f32 1.0, %v2195
        %v2197 = vrcp.pop %v2187
        %v2198 = vmul.f32 1.0, %v2197
        %v2199 = vrcp.pop %v2188
        %v2200 = vmul.f32 1.0, %v2199
        %v2201 = vrcp.pop %v2189
        %v2202 = vmul.f32 1.0, %v2201
        %v2203 = vrcp.pop %v2190
        %v2204 = vmul.f32 1.0, %v2203
        %v2205 = vrcp.pop %v2191
        %v2206 = vmul.f32 1.0, %v2205
        %v2207 = vrcp.pop %v2192
        %v2208 = vmul.f32 1.0, %v2207
        %2217 = vrot.lane.b32.xlu0 %v2025, 32
        %v2218 = vpop.permute.xlu0 %2217
        %2219 = vrot.lane.b32.xlu0 %v2026, 32
        %v2220 = vpop.permute.xlu0 %2219
        %2221 = vrot.lane.b32.xlu0 %v2027, 32
        %v2222 = vpop.permute.xlu0 %2221
        %2223 = vrot.lane.b32.xlu0 %v2028, 32
        %v2224 = vpop.permute.xlu0 %2223
        %2225 = vrot.lane.b32.xlu0 %v2029, 32
        %v2226 = vpop.permute.xlu0 %2225
        %2227 = vrot.lane.b32.xlu0 %v2030, 32
        %v2228 = vpop.permute.xlu0 %2227
        %2229 = vrot.lane.b32.xlu0 %v2031, 32
        %v2230 = vpop.permute.xlu0 %2229
        %2231 = vrot.lane.b32.xlu0 %v2032, 32
        %v2232 = vpop.permute.xlu0 %2231
        %v2241 = vmul.f32 %v2194, %v2218
        %v2242 = vmul.f32 %v2196, %v2220
        %v2243 = vmul.f32 %v2198, %v2222
        %v2244 = vmul.f32 %v2200, %v2224
        %v2245 = vmul.f32 %v2202, %v2226
        %v2246 = vmul.f32 %v2204, %v2228
        %v2247 = vmul.f32 %v2206, %v2230
        %v2248 = vmul.f32 %v2208, %v2232
        %v2249 = vtanh.pop %v2017
        %v2250 = vtanh.pop %v2018
        %v2251 = vtanh.pop %v2019
        %v2252 = vtanh.pop %v2020
        %v2253 = vtanh.pop %v2021
        %v2254 = vtanh.pop %v2022
        %v2255 = vtanh.pop %v2023
        %v2256 = vtanh.pop %v2024
        %2265 = vrot.lane.b32.xlu0 %v2249, 32
        %v2266 = vpop.permute.xlu0 %2265
        %2267 = vrot.lane.b32.xlu0 %v2250, 32
        %v2268 = vpop.permute.xlu0 %2267
        %2269 = vrot.lane.b32.xlu0 %v2251, 32
        %v2270 = vpop.permute.xlu0 %2269
        %2271 = vrot.lane.b32.xlu0 %v2252, 32
        %v2272 = vpop.permute.xlu0 %2271
        %2273 = vrot.lane.b32.xlu0 %v2253, 32
        %v2274 = vpop.permute.xlu0 %2273
        %2275 = vrot.lane.b32.xlu0 %v2254, 32
        %v2276 = vpop.permute.xlu0 %2275
        %2277 = vrot.lane.b32.xlu0 %v2255, 32
        %v2278 = vpop.permute.xlu0 %2277
        %2279 = vrot.lane.b32.xlu0 %v2256, 32
        %v2280 = vpop.permute.xlu0 %2279
        %v2289 = vmul.f32 %v2090, %v2266
        %v2290 = vmul.f32 %v2092, %v2268
        %v2291 = vmul.f32 %v2094, %v2270
        %v2292 = vmul.f32 %v2096, %v2272
        %v2293 = vmul.f32 %v2098, %v2274
        %v2294 = vmul.f32 %v2100, %v2276
        %v2295 = vmul.f32 %v2102, %v2278
        %v2296 = vmul.f32 %v2104, %v2280
        %2305 = vrot.lane.b32.xlu0 %v2289, 32
        %v2306 = vpop.permute.xlu0 %2305
        %2307 = vrot.lane.b32.xlu0 %v2290, 32
        %v2308 = vpop.permute.xlu0 %2307
        %2309 = vrot.lane.b32.xlu0 %v2291, 32
        %v2310 = vpop.permute.xlu0 %2309
        %2311 = vrot.lane.b32.xlu0 %v2292, 32
        %v2312 = vpop.permute.xlu0 %2311
        %2313 = vrot.lane.b32.xlu0 %v2293, 32
        %v2314 = vpop.permute.xlu0 %2313
        %2315 = vrot.lane.b32.xlu0 %v2294, 32
        %v2316 = vpop.permute.xlu0 %2315
        %2317 = vrot.lane.b32.xlu0 %v2295, 32
        %v2318 = vpop.permute.xlu0 %2317
        %2319 = vrot.lane.b32.xlu0 %v2296, 32
        %v2320 = vpop.permute.xlu0 %2319
        %v2329 = vadd.f32 %v2241, %v2306
        %v2330 = vadd.f32 %v2242, %v2308
        %v2331 = vadd.f32 %v2243, %v2310
        %v2332 = vadd.f32 %v2244, %v2312
        %v2333 = vadd.f32 %v2245, %v2314
        %v2334 = vadd.f32 %v2246, %v2316
        %v2335 = vadd.f32 %v2247, %v2318
        %v2336 = vadd.f32 %v2248, %v2320
        %v2337 = vld [vmem:[%s6] sm:$0xff]
        %v2338 = vld [vmem:[%s6 + $0x8] sm:$0xff]
        %v2339 = vld [vmem:[%s6 + $0x10] sm:$0xff]
        %v2340 = vld [vmem:[%s6 + $0x18] sm:$0xff]
        %v2341 = vld [vmem:[%s6 + $0x20] sm:$0xff]
        %v2342 = vld [vmem:[%s6 + $0x28] sm:$0xff]
        %v2343 = vld [vmem:[%s6 + $0x30] sm:$0xff]
        %v2344 = vld [vmem:[%s6 + $0x38] sm:$0xff]
        %v2345 = vmul.f32 %v2025, %v2337
        %v2346 = vmul.f32 %v2026, %v2338
        %v2347 = vmul.f32 %v2027, %v2339
        %v2348 = vmul.f32 %v2028, %v2340
        %v2349 = vmul.f32 %v2029, %v2341
        %v2350 = vmul.f32 %v2030, %v2342
        %v2351 = vmul.f32 %v2031, %v2343
        %v2352 = vmul.f32 %v2032, %v2344
        %2361 = vrot.lane.b32.xlu0 %v2345, 64
        %v2362 = vpop.permute.xlu0 %2361
        %2363 = vrot.lane.b32.xlu0 %v2346, 64
        %v2364 = vpop.permute.xlu0 %2363
        %2365 = vrot.lane.b32.xlu0 %v2347, 64
        %v2366 = vpop.permute.xlu0 %2365
        %2367 = vrot.lane.b32.xlu0 %v2348, 64
        %v2368 = vpop.permute.xlu0 %2367
        %2369 = vrot.lane.b32.xlu0 %v2349, 64
        %v2370 = vpop.permute.xlu0 %2369
        %2371 = vrot.lane.b32.xlu0 %v2350, 64
        %v2372 = vpop.permute.xlu0 %2371
        %2373 = vrot.lane.b32.xlu0 %v2351, 64
        %v2374 = vpop.permute.xlu0 %2373
        %2375 = vrot.lane.b32.xlu0 %v2352, 64
        %v2376 = vpop.permute.xlu0 %2375
        %v2385 = vadd.f32 %v2017, %v2362
        %v2386 = vadd.f32 %v2018, %v2364
        %v2387 = vadd.f32 %v2019, %v2366
        %v2388 = vadd.f32 %v2020, %v2368
        %v2389 = vadd.f32 %v2021, %v2370
        %v2390 = vadd.f32 %v2022, %v2372
        %v2391 = vadd.f32 %v2023, %v2374
        %v2392 = vadd.f32 %v2024, %v2376
        %v2393 = vsub.f32 0.0, %v2385
        %v2394 = vsub.f32 0.0, %v2386
        %v2395 = vsub.f32 0.0, %v2387
        %v2396 = vsub.f32 0.0, %v2388
        %v2397 = vsub.f32 0.0, %v2389
        %v2398 = vsub.f32 0.0, %v2390
        %v2399 = vsub.f32 0.0, %v2391
        %v2400 = vsub.f32 0.0, %v2392
        %v2401 = vmul.f32 %v2393, 1.442695
        %v2402 = vpow.pop %v2401
        %v2403 = vmul.f32 %v2394, 1.442695
        %v2404 = vpow.pop %v2403
        %v2405 = vmul.f32 %v2395, 1.442695
        %v2406 = vpow.pop %v2405
        %v2407 = vmul.f32 %v2396, 1.442695
        %v2408 = vpow.pop %v2407
        %v2409 = vmul.f32 %v2397, 1.442695
        %v2410 = vpow.pop %v2409
        %v2411 = vmul.f32 %v2398, 1.442695
        %v2412 = vpow.pop %v2411
        %v2413 = vmul.f32 %v2399, 1.442695
        %v2414 = vpow.pop %v2413
        %v2415 = vmul.f32 %v2400, 1.442695
        %v2416 = vpow.pop %v2415
        %v2417 = vadd.f32 %v2402, 1.0
        %v2418 = vadd.f32 %v2404, 1.0
        %v2419 = vadd.f32 %v2406, 1.0
        %v2420 = vadd.f32 %v2408, 1.0
        %v2421 = vadd.f32 %v2410, 1.0
        %v2422 = vadd.f32 %v2412, 1.0
        %v2423 = vadd.f32 %v2414, 1.0
        %v2424 = vadd.f32 %v2416, 1.0
        %v2425 = vrcp.pop %v2417
        %v2426 = vmul.f32 1.0, %v2425
        %v2427 = vrcp.pop %v2418
        %v2428 = vmul.f32 1.0, %v2427
        %v2429 = vrcp.pop %v2419
        %v2430 = vmul.f32 1.0, %v2429
        %v2431 = vrcp.pop %v2420
        %v2432 = vmul.f32 1.0, %v2431
        %v2433 = vrcp.pop %v2421
        %v2434 = vmul.f32 1.0, %v2433
        %v2435 = vrcp.pop %v2422
        %v2436 = vmul.f32 1.0, %v2435
        %v2437 = vrcp.pop %v2423
        %v2438 = vmul.f32 1.0, %v2437
        %v2439 = vrcp.pop %v2424
        %v2440 = vmul.f32 1.0, %v2439
        %v2441 = vtanh.pop %v2329
        %v2442 = vtanh.pop %v2330
        %v2443 = vtanh.pop %v2331
        %v2444 = vtanh.pop %v2332
        %v2445 = vtanh.pop %v2333
        %v2446 = vtanh.pop %v2334
        %v2447 = vtanh.pop %v2335
        %v2448 = vtanh.pop %v2336
        %2457 = vrot.lane.b32.xlu0 %v2441, 32
        %v2458 = vpop.permute.xlu0 %2457
        %2459 = vrot.lane.b32.xlu0 %v2442, 32
        %v2460 = vpop.permute.xlu0 %2459
        %2461 = vrot.lane.b32.xlu0 %v2443, 32
        %v2462 = vpop.permute.xlu0 %2461
        %2463 = vrot.lane.b32.xlu0 %v2444, 32
        %v2464 = vpop.permute.xlu0 %2463
        %2465 = vrot.lane.b32.xlu0 %v2445, 32
        %v2466 = vpop.permute.xlu0 %2465
        %2467 = vrot.lane.b32.xlu0 %v2446, 32
        %v2468 = vpop.permute.xlu0 %2467
        %2469 = vrot.lane.b32.xlu0 %v2447, 32
        %v2470 = vpop.permute.xlu0 %2469
        %2471 = vrot.lane.b32.xlu0 %v2448, 32
        %v2472 = vpop.permute.xlu0 %2471
        %v2481 = vmul.f32 %v2426, %v2458
        %v2482 = vmul.f32 %v2428, %v2460
        %v2483 = vmul.f32 %v2430, %v2462
        %v2484 = vmul.f32 %v2432, %v2464
        %v2485 = vmul.f32 %v2434, %v2466
        %v2486 = vmul.f32 %v2436, %v2468
        %v2487 = vmul.f32 %v2438, %v2470
        %v2488 = vmul.f32 %v2440, %v2472
        %2497 = vrot.lane.b32.xlu0 %v2481, 64
        %v2498 = vpop.permute.xlu0 %2497
        %2499 = vrot.lane.b32.xlu0 %v2482, 64
        %v2500 = vpop.permute.xlu0 %2499
        %2501 = vrot.lane.b32.xlu0 %v2483, 64
        %v2502 = vpop.permute.xlu0 %2501
        %2503 = vrot.lane.b32.xlu0 %v2484, 64
        %v2504 = vpop.permute.xlu0 %2503
        %2505 = vrot.lane.b32.xlu0 %v2485, 64
        %v2506 = vpop.permute.xlu0 %2505
        %2507 = vrot.lane.b32.xlu0 %v2486, 64
        %v2508 = vpop.permute.xlu0 %2507
        %2509 = vrot.lane.b32.xlu0 %v2487, 64
        %v2510 = vpop.permute.xlu0 %2509
        %2511 = vrot.lane.b32.xlu0 %v2488, 64
        %v2512 = vpop.permute.xlu0 %2511
        %vm2521 = vcmask 261120
        %2522 = vst.msk [vmem:[%s317] sm:$0xff] %vm2521, %v2498
        %2523 = vst.msk [vmem:[%s317 + $0x8] sm:$0xff] %vm2521, %v2500
        %2524 = vst.msk [vmem:[%s317 + $0x10] sm:$0xff] %vm2521, %v2502
        %2525 = vst.msk [vmem:[%s317 + $0x18] sm:$0xff] %vm2521, %v2504
        %2526 = vst.msk [vmem:[%s317 + $0x20] sm:$0xff] %vm2521, %v2506
        %2527 = vst.msk [vmem:[%s317 + $0x28] sm:$0xff] %vm2521, %v2508
        %2528 = vst.msk [vmem:[%s317 + $0x30] sm:$0xff] %vm2521, %v2510
        %2529 = vst.msk [vmem:[%s317 + $0x38] sm:$0xff] %vm2521, %v2512
        %2538 = vrot.lane.b32.xlu0 %v2329, 96
        %v2539 = vpop.permute.xlu0 %2538
        %2540 = vrot.lane.b32.xlu0 %v2330, 96
        %v2541 = vpop.permute.xlu0 %2540
        %2542 = vrot.lane.b32.xlu0 %v2331, 96
        %v2543 = vpop.permute.xlu0 %2542
        %2544 = vrot.lane.b32.xlu0 %v2332, 96
        %v2545 = vpop.permute.xlu0 %2544
        %2546 = vrot.lane.b32.xlu0 %v2333, 96
        %v2547 = vpop.permute.xlu0 %2546
        %2548 = vrot.lane.b32.xlu0 %v2334, 96
        %v2549 = vpop.permute.xlu0 %2548
        %2550 = vrot.lane.b32.xlu0 %v2335, 96
        %v2551 = vpop.permute.xlu0 %2550
        %2552 = vrot.lane.b32.xlu0 %v2336, 96
        %v2553 = vpop.permute.xlu0 %2552
        %2562 = vst.msk [vmem:[%s324] sm:$0xff] %vm2521, %v2539
        %2563 = vst.msk [vmem:[%s324 + $0x8] sm:$0xff] %vm2521, %v2541
        %2564 = vst.msk [vmem:[%s324 + $0x10] sm:$0xff] %vm2521, %v2543
        %2565 = vst.msk [vmem:[%s324 + $0x18] sm:$0xff] %vm2521, %v2545
        %2566 = vst.msk [vmem:[%s324 + $0x20] sm:$0xff] %vm2521, %v2547
        %2567 = vst.msk [vmem:[%s324 + $0x28] sm:$0xff] %vm2521, %v2549
        %2568 = vst.msk [vmem:[%s324 + $0x30] sm:$0xff] %vm2521, %v2551
        %2569 = vst.msk [vmem:[%s324 + $0x38] sm:$0xff] %vm2521, %v2553
        %s2570 = sand.u32 %s191, 1
        %s2571 = scalar_lea.sflag [#allocation3], %s2570
        %s2572 = sand.u32 %s191, 1
        %s2573 = smul.addr %s2572, 64
        %s2574 = scalar_lea.vmem [#allocation2], %s2573
        %s2575 = sand.u32 %s217, 1
        %s2576 = scalar_lea.sflag [#allocation5], %s2575
        %s2577 = sand.u32 %s217, 1
        %s2578 = smul.addr %s2577, 64
        %s2579 = scalar_lea.vmem [#allocation4], %s2578
        // Predicated region
        $region49: #{conv_lstm_cell.1} parent=47 // pred_check
          %p2580 = pneg %p201
        $region50: #{conv_lstm_cell.1} parent=47 // pred_check_branch
          %2582 = sbr.rel (%p2580) target = $region52
        $region51: #{conv_lstm_cell.1} parent=47 // pred_region
          %s2584 = ssub.s32 1024, 1024
          %2585 = vsyncadd %s2571, %s2584
          %s2586 = smul.addr %s26, 8
          %s2587 = smul.addr %s2586, 128
          %s2588 = scalar_lea.hbm %s7, %s2587
          %s2589 = sshll.u32 %s2574, 4
          %s2590 = int_to_ptr.vmem [resolvable:$true] %s2589
          %2595 = dma.vmem_to_hbm [thread:$0]  %s2590, 1024, %s2588, %s2571, 128, 128, 8
        $region52: #{conv_lstm_cell.1} parent=47 // pred_fallthru
          _
        // Predicated region
        $region53: #{conv_lstm_cell.1} parent=47 // pred_check
          %p2596 = pneg %p227
        $region54: #{conv_lstm_cell.1} parent=47 // pred_check_branch
          %2598 = sbr.rel (%p2596) target = $region56
        $region55: #{conv_lstm_cell.1} parent=47 // pred_region
          %s2600 = ssub.s32 1024, 1024
          %2601 = vsyncadd %s2576, %s2600
          %s2602 = smul.addr %s26, 8
          %s2603 = smul.addr %s2602, 128
          %s2604 = scalar_lea.hbm %s8, %s2603
          %s2605 = sshll.u32 %s2579, 4
          %s2606 = int_to_ptr.vmem [resolvable:$true] %s2605
          %2611 = dma.vmem_to_hbm [thread:$0]  %s2606, 1024, %s2604, %s2576, 128, 128, 8
        $region56: #{conv_lstm_cell.1} parent=47 // pred_fallthru
          _
      $region48: #{conv_lstm_cell.1} parent=5 // pred_fallthru
        _
      %p2612 = scmp.le.s32.totalorder 2, %s21
      // Predicated region
      $region57: #{conv_lstm_cell.1} parent=5 // pred_check
        %p2613 = pneg %p2612
      $region58: #{conv_lstm_cell.1} parent=5 // pred_check_branch
        %2615 = sbr.rel (%p2613) target = $region60
      $region59: #{conv_lstm_cell.1} parent=5 // pred_region
        %s2616 = ssub.s32 %s21, 2
        // Predicated region
        $region61: #{conv_lstm_cell.1} parent=59 // pred_check
          %p2617 = pneg %p207
        $region62: #{conv_lstm_cell.1} parent=59 // pred_check_branch
          %2619 = sbr.rel (%p2617) target = $region64
        $region63: #{conv_lstm_cell.1} parent=59 // pred_region
          %s2620 = sand.u32 %s192, 1
          %s2621 = scalar_lea.sflag [#allocation3], %s2620
          %s2622 = sand.u32 %s192, 1
          %s2623 = smul.addr %s2622, 64
          %s2624 = scalar_lea.vmem [#allocation2], %s2623
          %2625 = dma.done %s2621, 1024
        $region64: #{conv_lstm_cell.1} parent=59 // pred_fallthru
          _
        // Predicated region
        $region65: #{conv_lstm_cell.1} parent=59 // pred_check
          %p2626 = pneg %p233
        $region66: #{conv_lstm_cell.1} parent=59 // pred_check_branch
          %2628 = sbr.rel (%p2626) target = $region68
        $region67: #{conv_lstm_cell.1} parent=59 // pred_region
          %s2629 = sand.u32 %s218, 1
          %s2630 = scalar_lea.sflag [#allocation5], %s2629
          %s2631 = sand.u32 %s218, 1
          %s2632 = smul.addr %s2631, 64
          %s2633 = scalar_lea.vmem [#allocation4], %s2632
          %2634 = dma.done %s2630, 1024
        $region68: #{conv_lstm_cell.1} parent=59 // pred_fallthru
          _
      $region60: #{conv_lstm_cell.1} parent=5 // pred_fallthru
        _
    $region6: #{conv_lstm_cell.1} parent=1 // loop_footer
      %s25 = sadd.s32 1, %s21
    $region7: #{conv_lstm_cell.1} parent=1 // loop_footer_branch
      %20 = sbr.rel target = $region3
    $region8: #{conv_lstm_cell.1} parent=1 // loop_exit
      _
    %2635 = vsyncpa [#allocation3], 1
    %s2636 = scalar_lea.sflag [#allocation3], 1
    %2637 = vsyncpa %s2636, 1
    %2638 = vsyncpa [#allocation5], 1
    %s2639 = scalar_lea.sflag [#allocation5], 1
    %2640 = vsyncpa %s2639, 1

</llo_original>
